<compile_context>
chip_gen: v7x
topology: tpu7x:2x2x1
jax: 0.10.0
libtpu: 0.0.40
codegen_flags: <defaults>
</compile_context>

<pallas_src>
import functools
import math

import jax
import jax.numpy as jnp
from jax.experimental import pallas as pl
from jax.experimental.pallas import tpu as pltpu


def _round_up(x, m):
    return ((x + m - 1) // m) * m


def _erf_as(x):
    # Abramowitz & Stegun 7.1.26 (|abs err| < 1.5e-7) with an EXACT reciprocal.
    # Used only on the cheap (1, TB) row path (dens / e_hi), where accuracy of
    # the denominator matters most.
    a1, a2, a3, a4, a5 = (0.254829592, -0.284496736, 1.421413741,
                          -1.453152027, 1.061405429)
    p = 0.3275911
    sign = jnp.where(x < 0.0, -1.0, 1.0)
    ax = jnp.abs(x)
    t = 1.0 / (1.0 + p * ax)
    poly = ((((a5 * t + a4) * t + a3) * t + a2) * t + a1) * t
    return sign * (1.0 - poly * jnp.exp(-ax * ax))


def _erf_tanh(x):
    # Odd tanh-based erf:  erf(x) ~= tanh(c1*x + c3*x^3)  (GELU-style fit).
    # Max abs error ~4.5e-4, saturates correctly to +/-1 for large |x|
    # (arguments here reach |x| ~ 100 since sigma >= 0.01).  One EUP push per
    # element, no sign/abs/select handling — used only on the hot (A, TB) path.
    c1 = 1.1283791670955126      # 2 / sqrt(pi)
    c3 = 0.1009109
    return jnp.tanh((c1 + c3 * (x * x)) * x)


def _ctn_forward_kernel(xs_ref, rffw_ref, wlin_ref, blin_ref, as_ref, out_ref,
                        *, inv_sqrt_numrff):
    # Random Fourier features in feature-major (transposed) orientation.
    # Bias is folded into the matmul: rffw_ref = [rffW.T | rffb] (zero padded),
    # xs_ref = [Xs.T ; ones ; zeros]  ->  z = rffW.T @ Xs.T + rffb.
    z = jnp.dot(rffw_ref[...], xs_ref[...],
                preferred_element_type=jnp.float32)          # (numrff_pad, TB)
    rff = jnp.cos(z) * inv_sqrt_numrff                       # (numrff_pad, TB)

    # Linear(numrff -> 2) on the MXU (weight rows zero-padded 2 -> 8).
    pre = jnp.dot(wlin_ref[...], rff,
                  preferred_element_type=jnp.float32)        # (8, TB)
    pre0 = pre[0:1, :] + blin_ref[0:1, :]                    # (1, TB)
    pre1 = pre[1:2, :] + blin_ref[1:2, :]                    # (1, TB)

    mu = 1.0 / (1.0 + jnp.exp(-pre0))                        # sigmoid, (1, TB)
    # softplus with clamped exp argument (torch.nn.Softplus threshold=20).
    softplus = jnp.where(pre1 > 20.0, pre1,
                         jnp.log(1.0 + jnp.exp(jnp.minimum(pre1, 20.0))))
    sigma = 0.01 + softplus                                  # (1, TB)

    # Row-wise (O(B)) exact divides — cheap, keeps the accuracy budget for the
    # hot loop.
    inv_sigma = 1.0 / sigma                                  # (1, TB)
    e_hi = _erf_as((1.0 - mu) * inv_sigma)                   # (1, TB)
    dens = e_hi + _erf_as(mu * inv_sigma)                    # (1, TB)
    inv_dens = 1.0 / dens                                    # (1, TB), exact

    a = as_ref[...]                                          # (A_pad, TB)
    nums = e_hi + _erf_tanh((mu - a) * inv_sigma)            # (A_pad, TB)
    out_ref[...] = a * nums * inv_dens                       # sublane broadcast


def cauchy_truncated_normal_forward(xs, actions, rffw, rffb, wlin, blin):
    """xs: [B, dobs], actions: [B, A] -> [B, A]."""
    xs = xs.astype(jnp.float32)
    actions = actions.astype(jnp.float32)
    B, dobs = xs.shape
    A = actions.shape[1]
    numrff = rffw.shape[1]

    LANE = 128
    A_pad = _round_up(max(A, 1), 8)          # sublane axis of the hot tile
    K_pad = _round_up(dobs + 1, 8)           # contraction dim (xs + ones row)
    numrff_pad = _round_up(numrff, LANE)

    # --- VMEM budget (bytes), generation-aware-conservative -----------------
    # Streamed, double-buffered: xs_t (K_pad, TB), actions (A_pad, TB),
    # out (A_pad, TB).  Resident weights counted with 2 buffers (worst case).
    # Single-buffered intermediates: z/rff (numrff_pad, TB), nums + temporaries
    # (A_pad, TB), plus a handful of (1, TB) rows.
    ib = 4
    weights_bytes = 2 * ib * (numrff_pad * K_pad + 8 * numrff_pad + 2)
    stream_per_col = 2 * ib * (K_pad + 2 * A_pad)
    interm_per_col = ib * (2 * numrff_pad + 4 * A_pad + 32)
    budget = 20 * 1024 * 1024                # fits v7x's 64 MiB/TC comfortably
    tb = (budget - weights_bytes) // (stream_per_col + interm_per_col)
    TB = max(LANE, min(2048, (tb // LANE) * LANE))
    TB = min(TB, _round_up(B, LANE))
    B_pad = _round_up(B, TB)
    vmem_est = weights_bytes + TB * (stream_per_col + interm_per_col)
    vmem_limit = int(min(96 * 1024 * 1024,
                         max(vmem_est + (4 << 20), 32 * 1024 * 1024)))

    # --- wrapper-side layout plumbing (transposed, lane = B) -----------------
    xs_aug = jnp.concatenate([xs, jnp.ones((B, 1), jnp.float32)], axis=1)
    xs_aug = jnp.pad(xs_aug, ((0, B_pad - B), (0, K_pad - (dobs + 1))))
    xs_t = xs_aug.T                                           # (K_pad, B_pad)

    rffw_aug = jnp.concatenate(
        [rffw.astype(jnp.float32).T,
         rffb.astype(jnp.float32).reshape(-1, 1)], axis=1)    # (numrff, dobs+1)
    rffw_aug = jnp.pad(rffw_aug,
                       ((0, numrff_pad - numrff), (0, K_pad - (dobs + 1))))

    wlin_p = jnp.pad(wlin.astype(jnp.float32),
                     ((0, 8 - 2), (0, numrff_pad - numrff)))  # (8, numrff_pad)
    blin_p = blin.astype(jnp.float32).reshape(2, 1)           # (2, 1)

    as_t = jnp.pad(actions.T, ((0, A_pad - A), (0, B_pad - B)))  # (A_pad, B_pad)

    kernel = functools.partial(_ctn_forward_kernel,
                               inv_sqrt_numrff=1.0 / math.sqrt(numrff))

    out_t = pl.pallas_call(
        kernel,
        out_shape=jax.ShapeDtypeStruct((A_pad, B_pad), jnp.float32),
        grid=(B_pad // TB,),
        in_specs=[
            pl.BlockSpec((K_pad, TB), lambda i: (0, i)),           # xs_t (tiled)
            pl.BlockSpec((numrff_pad, K_pad), lambda i: (0, 0)),   # rffW|rffb
            pl.BlockSpec((8, numrff_pad), lambda i: (0, 0)),       # W_lin (pad)
            pl.BlockSpec((2, 1), lambda i: (0, 0)),                # b_lin
            pl.BlockSpec((A_pad, TB), lambda i: (0, i)),           # actions_t
        ],
        out_specs=pl.BlockSpec((A_pad, TB), lambda i: (0, i)),
        compiler_params=pltpu.CompilerParams(
            dimension_semantics=("parallel",),                     # megacore
            vmem_limit_bytes=vmem_limit),
    )(xs_t, rffw_aug, wlin_p, blin_p, as_t)

    return out_t[:A, :B].T


def _reference_forward(xs, actions, rffw, rffb, wlin, blin):
    # Pure-JAX reference of the PyTorch forward (uses jax.scipy erf).
    from jax.scipy.special import erf
    numrff = rffw.shape[1]
    rff = jnp.cos(xs @ rffw + rffb) / jnp.sqrt(float(numrff))
    pre = rff @ wlin.T + blin
    mu = jax.nn.sigmoid(pre[:, 0:1])
    sigma = 0.01 + jnp.where(pre[:, 1:2] > 20.0, pre[:, 1:2],
                             jnp.log(1.0 + jnp.exp(pre[:, 1:2])))
    e_hi = erf((1.0 - mu) / sigma)
    dens = e_hi + erf(mu / sigma)
    nums = e_hi + erf((mu - actions) / sigma)
    return actions * nums / dens


if __name__ == "__main__":
    # Small, forward-consistent shapes.
    B, dobs, numrff, A = 8, 16, 128, 8
    cauchy_sigma = 1.0

    key = jax.random.PRNGKey(0)
    k_w, k_b, k_lw, k_lb, k_x, k_a = jax.random.split(key, 6)

    # Deterministic parameter init mirroring the PyTorch __init__:
    rffw = cauchy_sigma * jax.random.cauchy(k_w, (dobs, numrff), dtype=jnp.float32)
    rffb = 2.0 * math.pi * jax.random.uniform(k_b, (numrff,), dtype=jnp.float32)
    bound = 1.0 / math.sqrt(numrff)  # torch.nn.Linear default init bounds
    wlin = jax.random.uniform(k_lw, (2, numrff), minval=-bound, maxval=bound,
                              dtype=jnp.float32)
    blin = jax.random.uniform(k_lb, (2,), minval=-bound, maxval=bound,
                              dtype=jnp.float32)

    xs = jax.random.normal(k_x, (B, dobs), dtype=jnp.float32)
    actions = jax.random.uniform(k_a, (B, A), dtype=jnp.float32)

    out = cauchy_truncated_normal_forward(xs, actions, rffw, rffb, wlin, blin)
    out = jax.block_until_ready(out)

    ref = _reference_forward(xs, actions, rffw, rffb, wlin, blin)
    assert out.shape == (B, A)
    # Error budget: tanh-erf on the broadcast numerator (~4.5e-4 worst case,
    # ~3e-4 after the exact 1/dens here); exact divides + A&S erf elsewhere.
    assert jnp.allclose(out, ref, rtol=1e-3, atol=1e-3), \
        float(jnp.max(jnp.abs(out - ref)))

    # TODO(synk): argmax()/argmaxone() (scipy.optimize bounded minimization /
    # torch.max+gather sampling path) are not part of forward() and are not
    # implemented as a kernel.
    print("KERNEL_OK")
</pallas_src>

<mosaic_0001>
module attributes {stable_mosaic.version = 11 : i64} {
  func.func @_ctn_forward_kernel(%arg0: i32, %arg1: memref<24x128xf32, #tpu.memory_space<vmem>>, %arg2: memref<128x24xf32, #tpu.memory_space<vmem>>, %arg3: memref<8x128xf32, #tpu.memory_space<vmem>>, %arg4: memref<2x1xf32, #tpu.memory_space<vmem>>, %arg5: memref<8x128xf32, #tpu.memory_space<vmem>>, %arg6: memref<8x128xf32, #tpu.memory_space<vmem>>) attributes {dimension_semantics = [#tpu.dimension_semantics<parallel>], iteration_bounds = array<i64: 1>, scalar_prefetch = 0 : i64, scratch_operands = 0 : i64, tpu.core_type = #tpu.core_type<tc>, window_params = [{transform_indices = @transform_0, window_bounds = array<i64: 24, 128>}, {pipeline_mode = #tpu.pipeline_mode<synchronous>, transform_indices = @transform_1, window_bounds = array<i64: 128, 24>}, {pipeline_mode = #tpu.pipeline_mode<synchronous>, transform_indices = @transform_2, window_bounds = array<i64: 8, 128>}, {pipeline_mode = #tpu.pipeline_mode<synchronous>, transform_indices = @transform_3, window_bounds = array<i64: 2, 1>}, {transform_indices = @transform_4, window_bounds = array<i64: 8, 128>}, {transform_indices = @transform_5, window_bounds = array<i64: 8, 128>}]} {
    %c0 = arith.constant 0 : index
    %c0_0 = arith.constant 0 : index
    %0 = vector.load %arg2[%c0, %c0_0] : memref<128x24xf32, #tpu.memory_space<vmem>>, vector<128x24xf32>
    %c0_1 = arith.constant 0 : index
    %c0_2 = arith.constant 0 : index
    %1 = vector.load %arg1[%c0_1, %c0_2] : memref<24x128xf32, #tpu.memory_space<vmem>>, vector<24x128xf32>
    %cst = arith.constant dense<0.000000e+00> : vector<128x128xf32>
    %2 = tpu.matmul %0, %1, %cst {dimension_numbers = #tpu.dot_dimension_numbers<[1], [0], [0], [1], [0, 0, 1, 1], [], []>} : vector<128x24xf32>, vector<24x128xf32>, vector<128x128xf32> -> vector<128x128xf32>
    %3 = math.cos %2 : vector<128x128xf32>
    %cst_3 = arith.constant 0.0883883461 : f32
    %4 = vector.broadcast %cst_3 : f32 to vector<128x128xf32>
    %5 = arith.mulf %3, %4 : vector<128x128xf32>
    %c0_4 = arith.constant 0 : index
    %c0_5 = arith.constant 0 : index
    %6 = vector.load %arg3[%c0_4, %c0_5] : memref<8x128xf32, #tpu.memory_space<vmem>>, vector<8x128xf32>
    %cst_6 = arith.constant dense<0.000000e+00> : vector<8x128xf32>
    %7 = tpu.matmul %6, %5, %cst_6 {dimension_numbers = #tpu.dot_dimension_numbers<[1], [0], [0], [1], [0, 0, 1, 1], [], []>} : vector<8x128xf32>, vector<128x128xf32>, vector<8x128xf32> -> vector<8x128xf32>
    %8 = vector.extract_strided_slice %7 {offsets = [0, 0], sizes = [1, 128], strides = [1, 1]} : vector<8x128xf32> to vector<1x128xf32>
    %c0_7 = arith.constant 0 : index
    %c0_8 = arith.constant 0 : index
    %9 = vector.load %arg4[%c0_7, %c0_8] : memref<2x1xf32, #tpu.memory_space<vmem>>, vector<1x1xf32>
    %10 = vector.broadcast %9 : vector<1x1xf32> to vector<1x128xf32>
    %11 = arith.addf %8, %10 : vector<1x128xf32>
    %12 = vector.extract_strided_slice %7 {offsets = [1, 0], sizes = [1, 128], strides = [1, 1]} : vector<8x128xf32> to vector<1x128xf32>
    %c1 = arith.constant 1 : index
    %c0_9 = arith.constant 0 : index
    %13 = vector.load %arg4[%c1, %c0_9] : memref<2x1xf32, #tpu.memory_space<vmem>>, vector<1x1xf32>
    %14 = vector.broadcast %13 : vector<1x1xf32> to vector<1x128xf32>
    %15 = arith.addf %12, %14 : vector<1x128xf32>
    %cst_10 = arith.constant 0.000000e+00 : f32
    %16 = vector.broadcast %cst_10 : f32 to vector<1x128xf32>
    %17 = arith.subf %16, %11 : vector<1x128xf32>
    %18 = math.exp %17 : vector<1x128xf32>
    %cst_11 = arith.constant 1.000000e+00 : f32
    %19 = vector.broadcast %cst_11 : f32 to vector<1x128xf32>
    %20 = arith.addf %19, %18 : vector<1x128xf32>
    %cst_12 = arith.constant 1.000000e+00 : f32
    %21 = vector.broadcast %cst_12 : f32 to vector<1x128xf32>
    %22 = arith.divf %21, %20 : vector<1x128xf32>
    %cst_13 = arith.constant 2.000000e+01 : f32
    %23 = vector.broadcast %cst_13 : f32 to vector<1x128xf32>
    %24 = arith.cmpf ogt, %15, %23 : vector<1x128xf32>
    %cst_14 = arith.constant 2.000000e+01 : f32
    %25 = vector.broadcast %cst_14 : f32 to vector<1x128xf32>
    %26 = arith.minimumf %15, %25 : vector<1x128xf32>
    %27 = math.exp %26 : vector<1x128xf32>
    %cst_15 = arith.constant 1.000000e+00 : f32
    %28 = vector.broadcast %cst_15 : f32 to vector<1x128xf32>
    %29 = arith.addf %28, %27 : vector<1x128xf32>
    %30 = math.log %29 : vector<1x128xf32>
    %31 = arith.select %24, %15, %30 : vector<1x128xi1>, vector<1x128xf32>
    %cst_16 = arith.constant 0.00999999977 : f32
    %32 = vector.broadcast %cst_16 : f32 to vector<1x128xf32>
    %33 = arith.addf %32, %31 : vector<1x128xf32>
    %cst_17 = arith.constant 1.000000e+00 : f32
    %34 = vector.broadcast %cst_17 : f32 to vector<1x128xf32>
    %35 = arith.divf %34, %33 : vector<1x128xf32>
    %cst_18 = arith.constant 1.000000e+00 : f32
    %36 = vector.broadcast %cst_18 : f32 to vector<1x128xf32>
    %37 = arith.subf %36, %22 : vector<1x128xf32>
    %38 = arith.mulf %37, %35 : vector<1x128xf32>
    %cst_19 = arith.constant 0.000000e+00 : f32
    %39 = vector.broadcast %cst_19 : f32 to vector<1x128xf32>
    %40 = arith.cmpf olt, %38, %39 : vector<1x128xf32>
    %cst_20 = arith.constant -1.000000e+00 : f32
    %cst_21 = arith.constant 1.000000e+00 : f32
    %41 = vector.broadcast %cst_20 : f32 to vector<1x128xf32>
    %42 = vector.broadcast %cst_21 : f32 to vector<1x128xf32>
    %43 = arith.select %40, %41, %42 : vector<1x128xi1>, vector<1x128xf32>
    %44 = math.absf %38 : vector<1x128xf32>
    %cst_22 = arith.constant 0.327591091 : f32
    %45 = vector.broadcast %cst_22 : f32 to vector<1x128xf32>
    %46 = arith.mulf %45, %44 : vector<1x128xf32>
    %cst_23 = arith.constant 1.000000e+00 : f32
    %47 = vector.broadcast %cst_23 : f32 to vector<1x128xf32>
    %48 = arith.addf %47, %46 : vector<1x128xf32>
    %cst_24 = arith.constant 1.000000e+00 : f32
    %49 = vector.broadcast %cst_24 : f32 to vector<1x128xf32>
    %50 = arith.divf %49, %48 : vector<1x128xf32>
    %cst_25 = arith.constant 1.06140542 : f32
    %51 = vector.broadcast %cst_25 : f32 to vector<1x128xf32>
    %52 = arith.mulf %51, %50 : vector<1x128xf32>
    %cst_26 = arith.constant -1.45315206 : f32
    %53 = vector.broadcast %cst_26 : f32 to vector<1x128xf32>
    %54 = arith.addf %52, %53 : vector<1x128xf32>
    %55 = arith.mulf %54, %50 : vector<1x128xf32>
    %cst_27 = arith.constant 1.42141378 : f32
    %56 = vector.broadcast %cst_27 : f32 to vector<1x128xf32>
    %57 = arith.addf %55, %56 : vector<1x128xf32>
    %58 = arith.mulf %57, %50 : vector<1x128xf32>
    %cst_28 = arith.constant -0.284496725 : f32
    %59 = vector.broadcast %cst_28 : f32 to vector<1x128xf32>
    %60 = arith.addf %58, %59 : vector<1x128xf32>
    %61 = arith.mulf %60, %50 : vector<1x128xf32>
    %cst_29 = arith.constant 0.254829586 : f32
    %62 = vector.broadcast %cst_29 : f32 to vector<1x128xf32>
    %63 = arith.addf %61, %62 : vector<1x128xf32>
    %64 = arith.mulf %63, %50 : vector<1x128xf32>
    %cst_30 = arith.constant 0.000000e+00 : f32
    %65 = vector.broadcast %cst_30 : f32 to vector<1x128xf32>
    %66 = arith.subf %65, %44 : vector<1x128xf32>
    %67 = arith.mulf %66, %44 : vector<1x128xf32>
    %68 = math.exp %67 : vector<1x128xf32>
    %69 = arith.mulf %64, %68 : vector<1x128xf32>
    %cst_31 = arith.constant 1.000000e+00 : f32
    %70 = vector.broadcast %cst_31 : f32 to vector<1x128xf32>
    %71 = arith.subf %70, %69 : vector<1x128xf32>
    %72 = arith.mulf %43, %71 : vector<1x128xf32>
    %73 = arith.mulf %22, %35 : vector<1x128xf32>
    %cst_32 = arith.constant 0.000000e+00 : f32
    %74 = vector.broadcast %cst_32 : f32 to vector<1x128xf32>
    %75 = arith.cmpf olt, %73, %74 : vector<1x128xf32>
    %cst_33 = arith.constant -1.000000e+00 : f32
    %cst_34 = arith.constant 1.000000e+00 : f32
    %76 = vector.broadcast %cst_33 : f32 to vector<1x128xf32>
    %77 = vector.broadcast %cst_34 : f32 to vector<1x128xf32>
    %78 = arith.select %75, %76, %77 : vector<1x128xi1>, vector<1x128xf32>
    %79 = math.absf %73 : vector<1x128xf32>
    %cst_35 = arith.constant 0.327591091 : f32
    %80 = vector.broadcast %cst_35 : f32 to vector<1x128xf32>
    %81 = arith.mulf %80, %79 : vector<1x128xf32>
    %cst_36 = arith.constant 1.000000e+00 : f32
    %82 = vector.broadcast %cst_36 : f32 to vector<1x128xf32>
    %83 = arith.addf %82, %81 : vector<1x128xf32>
    %cst_37 = arith.constant 1.000000e+00 : f32
    %84 = vector.broadcast %cst_37 : f32 to vector<1x128xf32>
    %85 = arith.divf %84, %83 : vector<1x128xf32>
    %cst_38 = arith.constant 1.06140542 : f32
    %86 = vector.broadcast %cst_38 : f32 to vector<1x128xf32>
    %87 = arith.mulf %86, %85 : vector<1x128xf32>
    %cst_39 = arith.constant -1.45315206 : f32
    %88 = vector.broadcast %cst_39 : f32 to vector<1x128xf32>
    %89 = arith.addf %87, %88 : vector<1x128xf32>
    %90 = arith.mulf %89, %85 : vector<1x128xf32>
    %cst_40 = arith.constant 1.42141378 : f32
    %91 = vector.broadcast %cst_40 : f32 to vector<1x128xf32>
    %92 = arith.addf %90, %91 : vector<1x128xf32>
    %93 = arith.mulf %92, %85 : vector<1x128xf32>
    %cst_41 = arith.constant -0.284496725 : f32
    %94 = vector.broadcast %cst_41 : f32 to vector<1x128xf32>
    %95 = arith.addf %93, %94 : vector<1x128xf32>
    %96 = arith.mulf %95, %85 : vector<1x128xf32>
    %cst_42 = arith.constant 0.254829586 : f32
    %97 = vector.broadcast %cst_42 : f32 to vector<1x128xf32>
    %98 = arith.addf %96, %97 : vector<1x128xf32>
    %99 = arith.mulf %98, %85 : vector<1x128xf32>
    %cst_43 = arith.constant 0.000000e+00 : f32
    %100 = vector.broadcast %cst_43 : f32 to vector<1x128xf32>
    %101 = arith.subf %100, %79 : vector<1x128xf32>
    %102 = arith.mulf %101, %79 : vector<1x128xf32>
    %103 = math.exp %102 : vector<1x128xf32>
    %104 = arith.mulf %99, %103 : vector<1x128xf32>
    %cst_44 = arith.constant 1.000000e+00 : f32
    %105 = vector.broadcast %cst_44 : f32 to vector<1x128xf32>
    %106 = arith.subf %105, %104 : vector<1x128xf32>
    %107 = arith.mulf %78, %106 : vector<1x128xf32>
    %108 = arith.addf %72, %107 : vector<1x128xf32>
    %cst_45 = arith.constant 1.000000e+00 : f32
    %109 = vector.broadcast %cst_45 : f32 to vector<1x128xf32>
    %110 = arith.divf %109, %108 : vector<1x128xf32>
    %c0_46 = arith.constant 0 : index
    %c0_47 = arith.constant 0 : index
    %111 = vector.load %arg5[%c0_46, %c0_47] : memref<8x128xf32, #tpu.memory_space<vmem>>, vector<8x128xf32>
    %112 = vector.broadcast %22 : vector<1x128xf32> to vector<8x128xf32>
    %113 = arith.subf %112, %111 : vector<8x128xf32>
    %114 = vector.broadcast %35 : vector<1x128xf32> to vector<8x128xf32>
    %115 = arith.mulf %113, %114 : vector<8x128xf32>
    %116 = arith.mulf %115, %115 : vector<8x128xf32>
    %cst_48 = arith.constant 0.100910902 : f32
    %117 = vector.broadcast %cst_48 : f32 to vector<8x128xf32>
    %118 = arith.mulf %117, %116 : vector<8x128xf32>
    %cst_49 = arith.constant 1.12837923 : f32
    %119 = vector.broadcast %cst_49 : f32 to vector<8x128xf32>
    %120 = arith.addf %119, %118 : vector<8x128xf32>
    %121 = arith.mulf %120, %115 : vector<8x128xf32>
    %122 = math.tanh %121 : vector<8x128xf32>
    %123 = vector.broadcast %72 : vector<1x128xf32> to vector<8x128xf32>
    %124 = arith.addf %123, %122 : vector<8x128xf32>
    %125 = arith.mulf %111, %124 : vector<8x128xf32>
    %126 = vector.broadcast %110 : vector<1x128xf32> to vector<8x128xf32>
    %127 = arith.mulf %125, %126 : vector<8x128xf32>
    %c0_50 = arith.constant 0 : index
    %c0_51 = arith.constant 0 : index
    %128 = vector.load %arg6[%c0_50, %c0_51] : memref<8x128xf32, #tpu.memory_space<vmem>>, vector<8x128xf32>
    tpu.vector_store %arg6[%c0_50, %c0_51], %127 {strides = array<i32>} : memref<8x128xf32, #tpu.memory_space<vmem>>, vector<8x128xf32>,
    return
  }
  func.func @transform_0(%arg0: i32) -> (i32, i32) {
    %c0_i32 = arith.constant 0 : i32
    %c0_i32_0 = arith.constant 0 : i32
    return %c0_i32, %arg0 : i32, i32
  }
  func.func @transform_1(%arg0: i32) -> (i32, i32) {
    %c0_i32 = arith.constant 0 : i32
    %c0_i32_0 = arith.constant 0 : i32
    %c0_i32_1 = arith.constant 0 : i32
    return %c0_i32, %c0_i32_0 : i32, i32
  }
  func.func @transform_2(%arg0: i32) -> (i32, i32) {
    %c0_i32 = arith.constant 0 : i32
    %c0_i32_0 = arith.constant 0 : i32
    %c0_i32_1 = arith.constant 0 : i32
    return %c0_i32, %c0_i32_0 : i32, i32
  }
  func.func @transform_3(%arg0: i32) -> (i32, i32) {
    %c0_i32 = arith.constant 0 : i32
    %c0_i32_0 = arith.constant 0 : i32
    %c0_i32_1 = arith.constant 0 : i32
    return %c0_i32, %c0_i32_0 : i32, i32
  }
  func.func @transform_4(%arg0: i32) -> (i32, i32) {
    %c0_i32 = arith.constant 0 : i32
    %c0_i32_0 = arith.constant 0 : i32
    return %c0_i32, %arg0 : i32, i32
  }
  func.func @transform_5(%arg0: i32) -> (i32, i32) {
    %c0_i32 = arith.constant 0 : i32
    %c0_i32_0 = arith.constant 0 : i32
    return %c0_i32, %arg0 : i32, i32
  }
}

</mosaic_0001>

<llo_original>
// kernel: tpu_custom_call.1
$region0: #{tpu_custom_call.1}
  #allocation0 [shape = 'u32[]', space=smem, size = 0x4, offset = 0x4, fixed_abs, tag = 'smem constant byte address 0x4 - core index']
  #allocation1 [shape = 'u32[144,128]{1,0:T(1,128)}', space=vmem, size = 0x12000, scoped, tag = 'internal scratch']
  %s0 = inlined_call_operand.vmem [shape: f32[24,128], index: 0, kind: input, shape index: {}]
  %s1 = inlined_call_operand.vmem [shape: f32[128,24], index: 1, kind: input, shape index: {}]
  %s2 = inlined_call_operand.vmem [shape: f32[8,128], index: 2, kind: input, shape index: {}]
  %s3 = inlined_call_operand.vmem [shape: f32[2,1], index: 3, kind: input, shape index: {}]
  %s4 = inlined_call_operand.vmem [shape: f32[8,128], index: 4, kind: input, shape index: {}]
  %s5 = inlined_call_operand.hbm [shape: f32[8,128], index: 5, kind: output, shape index: {}]
  %s6 = sld [smem:[#allocation0]]
  $region30: #{tpu_custom_call.1} parent=0
    _
  %s8 = ssub.s32 1, %s6
  %s9 = scalar_select 0, %s8, %s6
  $region1: #{tpu_custom_call.1} parent=0
    #allocation2 [shape = 'u8[4096]{0}', space=vmem, size = 0x1000, scoped, tag = 'output window, operand 0, single buffered']
    #allocation3 [shape = 's32[1]{0}', space=sflag, size = 0x4, scoped, tag = 'scoped memory for tpu_custom_call.1']
    %10 = vsyncpa [#allocation3], 0
    // Predicated region
    $region2: #{tpu_custom_call.1} parent=1 // pred_check
      _
    $region3: #{tpu_custom_call.1} parent=1 // pred_check_branch
      %12 = sbr.rel (0) target = $region5
    $region4: #{tpu_custom_call.1} parent=1 // pred_region
      _
    $region5: #{tpu_custom_call.1} parent=1 // pred_fallthru
      _
    // Predicated region
    $region6: #{tpu_custom_call.1} parent=1 // pred_check
      _
    $region7: #{tpu_custom_call.1} parent=1 // pred_check_branch
      %14 = sbr.rel (0) target = $region9
    $region8: #{tpu_custom_call.1} parent=1 // pred_region
      _
    $region9: #{tpu_custom_call.1} parent=1 // pred_fallthru
      _
    // Predicated region
    $region10: #{tpu_custom_call.1} parent=1 // pred_check
      _
    $region11: #{tpu_custom_call.1} parent=1 // pred_check_branch
      %16 = sbr.rel (0) target = $region13
    $region12: #{tpu_custom_call.1} parent=1 // pred_region
      _
    $region13: #{tpu_custom_call.1} parent=1 // pred_fallthru
      _
    // Predicated region
    $region14: #{tpu_custom_call.1} parent=1 // pred_check
      _
    $region15: #{tpu_custom_call.1} parent=1 // pred_check_branch
      %18 = sbr.rel (0) target = $region17
    $region16: #{tpu_custom_call.1} parent=1 // pred_region
      _
    $region17: #{tpu_custom_call.1} parent=1 // pred_fallthru
      _
    // Predicated region
    $region18: #{tpu_custom_call.1} parent=1 // pred_check
      _
    $region19: #{tpu_custom_call.1} parent=1 // pred_check_branch
      %20 = sbr.rel (0) target = $region21
    $region20: #{tpu_custom_call.1} parent=1 // pred_region
      _
    $region21: #{tpu_custom_call.1} parent=1 // pred_fallthru
      _
    %v21 = vld [vmem:[%s1] sm:$0xff]
    %v22 = vld [vmem:[%s1 + $0x8] sm:$0xff]
    %v23 = vld [vmem:[%s1 + $0x10] sm:$0xff]
    %v24 = vld [vmem:[%s1 + $0x18] sm:$0xff]
    %v25 = vld [vmem:[%s1 + $0x20] sm:$0xff]
    %v26 = vld [vmem:[%s1 + $0x28] sm:$0xff]
    %v27 = vld [vmem:[%s1 + $0x30] sm:$0xff]
    %v28 = vld [vmem:[%s1 + $0x38] sm:$0xff]
    %v29 = vld [vmem:[%s1 + $0x40] sm:$0xff]
    %v30 = vld [vmem:[%s1 + $0x48] sm:$0xff]
    %v31 = vld [vmem:[%s1 + $0x50] sm:$0xff]
    %v32 = vld [vmem:[%s1 + $0x58] sm:$0xff]
    %v33 = vld [vmem:[%s1 + $0x60] sm:$0xff]
    %v34 = vld [vmem:[%s1 + $0x68] sm:$0xff]
    %v35 = vld [vmem:[%s1 + $0x70] sm:$0xff]
    %v36 = vld [vmem:[%s1 + $0x78] sm:$0xff]
    %v37 = vld [vmem:[%s0] sm:$0xff]
    %v38 = vld [vmem:[%s0 + $0x8] sm:$0xff]
    %v39 = vld [vmem:[%s0 + $0x10] sm:$0xff]
    %vm40 = vcmask 195584
    %v42 = vsel %vm40, %v21, 0
    %v45 = vsel %vm40, %v22, 0
    %v48 = vsel %vm40, %v23, 0
    %v51 = vsel %vm40, %v24, 0
    %v54 = vsel %vm40, %v25, 0
    %v57 = vsel %vm40, %v26, 0
    %v60 = vsel %vm40, %v27, 0
    %v63 = vsel %vm40, %v28, 0
    %v66 = vsel %vm40, %v29, 0
    %v69 = vsel %vm40, %v30, 0
    %v72 = vsel %vm40, %v31, 0
    %v75 = vsel %vm40, %v32, 0
    %v78 = vsel %vm40, %v33, 0
    %v81 = vsel %vm40, %v34, 0
    %v84 = vsel %vm40, %v35, 0
    %v87 = vsel %vm40, %v36, 0
    %89 = vmatprep.subr.mxu0 0.0
    %90 = vmatpush1.msra.mxu0 %v37
    %91 = vmatprep.subr.mxu0 0.0
    %92 = vmatpush1.msra.mxu0 %v38
    %93 = vmatprep.subr.mxu0 0.0
    %94 = vmatpush1.msra.mxu0 %v39
    %95 = vmatprep.subr.mxu0 0.0
    %96 = vmatpush1.msra.mxu0 0.0
    %97 = vmatprep.subr.mxu0 0.0
    %98 = vmatpush1.msra.mxu0 0.0
    %99 = vmatprep.subr.mxu0 0.0
    %100 = vmatpush1.msra.mxu0 0.0
    %101 = vmatprep.subr.mxu0 0.0
    %102 = vmatpush1.msra.mxu0 0.0
    %103 = vmatprep.subr.mxu0 0.0
    %104 = vmatpush1.msra.mxu0 0.0
    %105 = vmatprep.subr.mxu0 0.0
    %106 = vmatpush1.msra.mxu0 0.0
    %107 = vmatprep.subr.mxu0 0.0
    %108 = vmatpush1.msra.mxu0 0.0
    %109 = vmatprep.subr.mxu0 0.0
    %110 = vmatpush1.msra.mxu0 0.0
    %111 = vmatprep.subr.mxu0 0.0
    %112 = vmatpush1.msra.mxu0 0.0
    %113 = vmatprep.subr.mxu0 0.0
    %114 = vmatpush1.msra.mxu0 0.0
    %115 = vmatprep.subr.mxu0 0.0
    %116 = vmatpush1.msra.mxu0 0.0
    %117 = vmatprep.subr.mxu0 0.0
    %118 = vmatpush1.msra.mxu0 0.0
    %119 = vmatprep.subr.mxu0 0.0
    %120 = vmatpush1.msra.mxu0 0.0
    %121 = vmatprep.subr.mxu0 0.0
    %122 = vmatpush1.msra.mxu0 0.0
    %123 = vmatprep.subr.mxu0 0.0
    %124 = vmatpush1.msra.mxu0 0.0
    %125 = vmatprep.subr.mxu0 0.0
    %126 = vmatpush1.msra.mxu0 0.0
    %127 = vmatprep.subr.mxu0 0.0
    %128 = vmatpush1.msra.mxu0 0.0
    %129 = vmatprep.subr.mxu0 0.0
    %130 = vmatpush1.msra.mxu0 0.0
    %131 = vmatprep.subr.mxu0 0.0
    %132 = vmatpush1.msra.mxu0 0.0
    %133 = vmatprep.subr.mxu0 0.0
    %134 = vmatpush1.msra.mxu0 0.0
    %135 = vmatprep.subr.mxu0 0.0
    %136 = vmatpush1.msra.mxu0 0.0
    %137 = vmatprep.subr.mxu0 0.0
    %138 = vmatpush1.msra.mxu0 0.0
    %139 = vmatprep.subr.mxu0 0.0
    %140 = vmatpush1.msra.mxu0 0.0
    %141 = vmatprep.subr.mxu0 0.0
    %142 = vmatpush1.msra.mxu0 0.0
    %143 = vmatprep.subr.mxu0 0.0
    %144 = vmatpush1.msra.mxu0 0.0
    %145 = vmatprep.subr.mxu0 0.0
    %146 = vmatpush1.msra.mxu0 0.0
    %147 = vmatprep.subr.mxu0 0.0
    %148 = vmatpush1.msra.mxu0 0.0
    %149 = vmatprep.subr.mxu0 0.0
    %150 = vmatpush1.msra.mxu0 0.0
    %151 = vmatprep.subr.mxu0 0.0
    %152 = vmatpush1.msra.mxu0 0.0
    %153 = vmatprep.mubr.f32.mxu0 0.0
    %154 = vmatmul.mubr.f32.gmra.mrb[0].mxu0 %v42
    %v155 = vpop.f32.mrb[0].mxu0
    %v156 = vadd.f32 0.0, %v155
    %v157 = vpop.f32.mrb[0].mxu0
    %158 = vmatprep.mubr.f32.mxu0 0.0
    %159 = vmatmul.mubr.f32.gmra.mrb[0].mxu0 %v45
    %v160 = vpop.f32.mrb[0].mxu0
    %v161 = vadd.f32 0.0, %v160
    %v162 = vpop.f32.mrb[0].mxu0
    %163 = vmatprep.mubr.f32.mxu0 0.0
    %164 = vmatmul.mubr.f32.gmra.mrb[0].mxu0 %v48
    %v165 = vpop.f32.mrb[0].mxu0
    %v166 = vadd.f32 0.0, %v165
    %v167 = vpop.f32.mrb[0].mxu0
    %168 = vmatprep.mubr.f32.mxu0 0.0
    %169 = vmatmul.mubr.f32.gmra.mrb[0].mxu0 %v51
    %v170 = vpop.f32.mrb[0].mxu0
    %v171 = vadd.f32 0.0, %v170
    %v172 = vpop.f32.mrb[0].mxu0
    %173 = vmatprep.mubr.f32.mxu0 0.0
    %174 = vmatmul.mubr.f32.gmra.mrb[0].mxu0 %v54
    %v175 = vpop.f32.mrb[0].mxu0
    %v176 = vadd.f32 0.0, %v175
    %v177 = vpop.f32.mrb[0].mxu0
    %178 = vmatprep.mubr.f32.mxu0 0.0
    %179 = vmatmul.mubr.f32.gmra.mrb[0].mxu0 %v57
    %v180 = vpop.f32.mrb[0].mxu0
    %v181 = vadd.f32 0.0, %v180
    %v182 = vpop.f32.mrb[0].mxu0
    %183 = vmatprep.mubr.f32.mxu0 0.0
    %184 = vmatmul.mubr.f32.gmra.mrb[0].mxu0 %v60
    %v185 = vpop.f32.mrb[0].mxu0
    %v186 = vadd.f32 0.0, %v185
    %v187 = vpop.f32.mrb[0].mxu0
    %188 = vmatprep.mubr.f32.mxu0 0.0
    %189 = vmatmul.mubr.f32.gmra.mrb[0].mxu0 %v63
    %v190 = vpop.f32.mrb[0].mxu0
    %v191 = vadd.f32 0.0, %v190
    %v192 = vpop.f32.mrb[0].mxu0
    %193 = vmatprep.mubr.f32.mxu0 0.0
    %194 = vmatmul.mubr.f32.gmra.mrb[0].mxu0 %v66
    %v195 = vpop.f32.mrb[0].mxu0
    %v196 = vadd.f32 0.0, %v195
    %v197 = vpop.f32.mrb[0].mxu0
    %198 = vmatprep.mubr.f32.mxu0 0.0
    %199 = vmatmul.mubr.f32.gmra.mrb[0].mxu0 %v69
    %v200 = vpop.f32.mrb[0].mxu0
    %v201 = vadd.f32 0.0, %v200
    %v202 = vpop.f32.mrb[0].mxu0
    %203 = vmatprep.mubr.f32.mxu0 0.0
    %204 = vmatmul.mubr.f32.gmra.mrb[0].mxu0 %v72
    %v205 = vpop.f32.mrb[0].mxu0
    %v206 = vadd.f32 0.0, %v205
    %v207 = vpop.f32.mrb[0].mxu0
    %208 = vmatprep.mubr.f32.mxu0 0.0
    %209 = vmatmul.mubr.f32.gmra.mrb[0].mxu0 %v75
    %v210 = vpop.f32.mrb[0].mxu0
    %v211 = vadd.f32 0.0, %v210
    %v212 = vpop.f32.mrb[0].mxu0
    %213 = vmatprep.mubr.f32.mxu0 0.0
    %214 = vmatmul.mubr.f32.gmra.mrb[0].mxu0 %v78
    %v215 = vpop.f32.mrb[0].mxu0
    %v216 = vadd.f32 0.0, %v215
    %v217 = vpop.f32.mrb[0].mxu0
    %218 = vmatprep.mubr.f32.mxu0 0.0
    %219 = vmatmul.mubr.f32.gmra.mrb[0].mxu0 %v81
    %v220 = vpop.f32.mrb[0].mxu0
    %v221 = vadd.f32 0.0, %v220
    %v222 = vpop.f32.mrb[0].mxu0
    %223 = vmatprep.mubr.f32.mxu0 0.0
    %224 = vmatmul.mubr.f32.gmra.mrb[0].mxu0 %v84
    %v225 = vpop.f32.mrb[0].mxu0
    %v226 = vadd.f32 0.0, %v225
    %v227 = vpop.f32.mrb[0].mxu0
    %228 = vmatprep.mubr.f32.mxu0 0.0
    %229 = vmatmul.mubr.f32.gmra.mrb[0].mxu0 %v87
    %v230 = vpop.f32.mrb[0].mxu0
    %v231 = vadd.f32 0.0, %v230
    %v232 = vpop.f32.mrb[0].mxu0
    %233 = vdwg.mxu0
    %v234 = vand.u32 2147483647, %v156
    %vm235 = vcmp.le.f32.partialorder %v234, 0.7853982
    %vm236 = vcmp.lt.s32.totalorder %v156, 0
    %v237 = vand.u32 %v156, 2139095040
    %v238 = vshrl.u32 %v237, 23
    %v239 = vsub.s32 %v238, 127
    %v240 = vand.u32 2147483647, %v156
    %v241 = vand.u32 %v240, 8388607
    %v242 = vor.u32 %v241, 8388608
    %v243 = vsub.s32 0, %v242
    %v244 = vadd.s32 %v239, 1
    %vm245 = vcmp.gt.s32.totalorder %v244, 0
    %v246 = vsel %vm245, %v244, 0
    %v247 = vshrl.u32 %v246, 5
    %v248 = vand.u32 %v246, 31
    %v249 = vsub.s32 32, %v248
    %v250 = vshrl.u32 683565275, %v249
    %v251 = vshll.u32 683565275, %v248
    %v252 = vshrl.u32 2475754826, %v249
    %v253 = vor.u32 %v251, %v252
    %v254 = vshll.u32 2475754826, %v248
    %v255 = vshrl.u32 2131351028, %v249
    %v256 = vor.u32 %v254, %v255
    %v257 = vshll.u32 2131351028, %v248
    %v258 = vshrl.u32 2102212464, %v249
    %v259 = vor.u32 %v257, %v258
    %v260 = vshll.u32 2102212464, %v248
    %v261 = vshrl.u32 920167782, %v249
    %v262 = vor.u32 %v260, %v261
    %v263 = vshll.u32 920167782, %v248
    %v264 = vshrl.u32 1326507024, %v249
    %v265 = vor.u32 %v263, %v264
    %vm266 = vcmp.lt.s32.totalorder %v247, 1
    %vm267 = vcmp.lt.s32.totalorder %v247, 2
    %vm268 = vcmp.lt.s32.totalorder %v247, 3
    %vm269 = vcmp.lt.s32.totalorder %v247, 4
    %v270 = vsel %vm266, %v250, %v253
    %v271 = vsel %vm269, %v259, 2102212464
    %v272 = vsel %vm268, %v256, %v271
    %v273 = vsel %vm267, %v270, %v272
    %v274 = vsel %vm266, %v253, %v256
    %v275 = vsel %vm269, %v262, 920167782
    %v276 = vsel %vm268, %v259, %v275
    %v277 = vsel %vm267, %v274, %v276
    %v278 = vsel %vm266, %v256, %v259
    %v279 = vsel %vm269, %v265, 1326507024
    %v280 = vsel %vm268, %v262, %v279
    %v281 = vsel %vm267, %v278, %v280
    %v282 = vshll.u32 %v242, 8
    %v283 = vmul.u32.u64.compose %v282, %v281
    %v284 = vextract.low.u32 %v283
    %v285 = vextract.high.u32 %v283
    %v286 = vmul.u32.u64.compose %v282, %v277
    %v287 = vextract.low.u32 %v286
    %v288 = vextract.high.u32 %v286
    %v289 = vmul.u32 %v282, %v273
    %v290 = vadd.s32 %v285, %v287
    %vm291 = vc.u32 %v285, %v287
    %v292 = vadd.s32 %v288, 1
    %v293 = vsel %vm291, %v292, %v288
    %v294 = vadd.s32 %v289, %v293
    %v295 = vadd.s32 %v294, 536870912
    %v296 = vshrl.u32 %v295, 30
    %v297 = vshll.u32 %v296, 30
    %v298 = vsub.s32 %v294, %v297
    %vm299 = vcmp.lt.s32.totalorder %v298, 0
    %v300 = vsub.s32 0, %v298
    %v301 = vsel %vm299, %v300, %v298
    %v302 = vclz %v301
    %v303 = vsub.s32 %v302, 2
    %vm304 = vcmp.gt.s32.totalorder 0, %v303
    %v305 = vsel %vm304, 0, %v303
    %v306 = vsub.s32 32, %v305
    %v307 = vshll.u32 %v298, %v305
    %v308 = vshrl.u32 %v290, %v306
    %v309 = vor.u32 %v307, %v308
    %v310 = vsub.s32 4294967266, %v305
    %v311 = vadd.s32 %v310, 127
    %v312 = vshll.u32 %v311, 23
    %v313 = vor.u32 4788187, %v312
    %v314 = vand.u32 2147483647, %v313
    %v316 = vcvt.s32.f32 %v309
    %v317 = vmul.f32 %v316, %v314
    %v318 = vxor.u32 %v317, 2147483648
    %v319 = vsel %vm236, %v318, %v317
    %v320 = vsub.s32 4, %v296
    %v321 = vsel %vm236, %v320, %v296
    %v322 = vsel %vm235, %v156, %v319
    %v323 = vsel %vm235, 0, %v321
    %v324 = vcosq.f32.pop %v322
    %v325 = vsinq.f32.pop %v322
    %vm326 = vweird.f32 %v156
    %v327 = vand.u32 %v323, 3
    %vm328 = vcmp.lt.s32.totalorder %v327, 2
    %vm329 = vcmp.eq.s32.totalorder %v327, 0
    %v330 = vxor.u32 %v325, 2147483648
    %v331 = vsel %vm329, %v324, %v330
    %vm332 = vcmp.eq.s32.totalorder %v327, 2
    %v333 = vxor.u32 %v324, 2147483648
    %v334 = vsel %vm332, %v333, %v325
    %v335 = vsel %vm328, %v331, %v334
    %v336 = vsel %vm326, nan, %v335
    %v337 = vand.u32 2147483647, %v161
    %vm338 = vcmp.le.f32.partialorder %v337, 0.7853982
    %vm339 = vcmp.lt.s32.totalorder %v161, 0
    %v340 = vand.u32 %v161, 2139095040
    %v341 = vshrl.u32 %v340, 23
    %v342 = vsub.s32 %v341, 127
    %v343 = vand.u32 2147483647, %v161
    %v344 = vand.u32 %v343, 8388607
    %v345 = vor.u32 %v344, 8388608
    %v346 = vsub.s32 0, %v345
    %v347 = vadd.s32 %v342, 1
    %vm348 = vcmp.gt.s32.totalorder %v347, 0
    %v349 = vsel %vm348, %v347, 0
    %v350 = vshrl.u32 %v349, 5
    %v351 = vand.u32 %v349, 31
    %v352 = vsub.s32 32, %v351
    %v353 = vshrl.u32 683565275, %v352
    %v354 = vshll.u32 683565275, %v351
    %v355 = vshrl.u32 2475754826, %v352
    %v356 = vor.u32 %v354, %v355
    %v357 = vshll.u32 2475754826, %v351
    %v358 = vshrl.u32 2131351028, %v352
    %v359 = vor.u32 %v357, %v358
    %v360 = vshll.u32 2131351028, %v351
    %v361 = vshrl.u32 2102212464, %v352
    %v362 = vor.u32 %v360, %v361
    %v363 = vshll.u32 2102212464, %v351
    %v364 = vshrl.u32 920167782, %v352
    %v365 = vor.u32 %v363, %v364
    %v366 = vshll.u32 920167782, %v351
    %v367 = vshrl.u32 1326507024, %v352
    %v368 = vor.u32 %v366, %v367
    %vm369 = vcmp.lt.s32.totalorder %v350, 1
    %vm370 = vcmp.lt.s32.totalorder %v350, 2
    %vm371 = vcmp.lt.s32.totalorder %v350, 3
    %vm372 = vcmp.lt.s32.totalorder %v350, 4
    %v373 = vsel %vm369, %v353, %v356
    %v374 = vsel %vm372, %v362, 2102212464
    %v375 = vsel %vm371, %v359, %v374
    %v376 = vsel %vm370, %v373, %v375
    %v377 = vsel %vm369, %v356, %v359
    %v378 = vsel %vm372, %v365, 920167782
    %v379 = vsel %vm371, %v362, %v378
    %v380 = vsel %vm370, %v377, %v379
    %v381 = vsel %vm369, %v359, %v362
    %v382 = vsel %vm372, %v368, 1326507024
    %v383 = vsel %vm371, %v365, %v382
    %v384 = vsel %vm370, %v381, %v383
    %v385 = vshll.u32 %v345, 8
    %v386 = vmul.u32.u64.compose %v385, %v384
    %v387 = vextract.low.u32 %v386
    %v388 = vextract.high.u32 %v386
    %v389 = vmul.u32.u64.compose %v385, %v380
    %v390 = vextract.low.u32 %v389
    %v391 = vextract.high.u32 %v389
    %v392 = vmul.u32 %v385, %v376
    %v393 = vadd.s32 %v388, %v390
    %vm394 = vc.u32 %v388, %v390
    %v395 = vadd.s32 %v391, 1
    %v396 = vsel %vm394, %v395, %v391
    %v397 = vadd.s32 %v392, %v396
    %v398 = vadd.s32 %v397, 536870912
    %v399 = vshrl.u32 %v398, 30
    %v400 = vshll.u32 %v399, 30
    %v401 = vsub.s32 %v397, %v400
    %vm402 = vcmp.lt.s32.totalorder %v401, 0
    %v403 = vsub.s32 0, %v401
    %v404 = vsel %vm402, %v403, %v401
    %v405 = vclz %v404
    %v406 = vsub.s32 %v405, 2
    %vm407 = vcmp.gt.s32.totalorder 0, %v406
    %v408 = vsel %vm407, 0, %v406
    %v409 = vsub.s32 32, %v408
    %v410 = vshll.u32 %v401, %v408
    %v411 = vshrl.u32 %v393, %v409
    %v412 = vor.u32 %v410, %v411
    %v413 = vsub.s32 4294967266, %v408
    %v414 = vadd.s32 %v413, 127
    %v415 = vshll.u32 %v414, 23
    %v416 = vor.u32 4788187, %v415
    %v417 = vand.u32 2147483647, %v416
    %v419 = vcvt.s32.f32 %v412
    %v420 = vmul.f32 %v419, %v417
    %v421 = vxor.u32 %v420, 2147483648
    %v422 = vsel %vm339, %v421, %v420
    %v423 = vsub.s32 4, %v399
    %v424 = vsel %vm339, %v423, %v399
    %v425 = vsel %vm338, %v161, %v422
    %v426 = vsel %vm338, 0, %v424
    %v427 = vcosq.f32.pop %v425
    %v428 = vsinq.f32.pop %v425
    %vm429 = vweird.f32 %v161
    %v430 = vand.u32 %v426, 3
    %vm431 = vcmp.lt.s32.totalorder %v430, 2
    %vm432 = vcmp.eq.s32.totalorder %v430, 0
    %v433 = vxor.u32 %v428, 2147483648
    %v434 = vsel %vm432, %v427, %v433
    %vm435 = vcmp.eq.s32.totalorder %v430, 2
    %v436 = vxor.u32 %v427, 2147483648
    %v437 = vsel %vm435, %v436, %v428
    %v438 = vsel %vm431, %v434, %v437
    %v439 = vsel %vm429, nan, %v438
    %v440 = vand.u32 2147483647, %v166
    %vm441 = vcmp.le.f32.partialorder %v440, 0.7853982
    %vm442 = vcmp.lt.s32.totalorder %v166, 0
    %v443 = vand.u32 %v166, 2139095040
    %v444 = vshrl.u32 %v443, 23
    %v445 = vsub.s32 %v444, 127
    %v446 = vand.u32 2147483647, %v166
    %v447 = vand.u32 %v446, 8388607
    %v448 = vor.u32 %v447, 8388608
    %v449 = vsub.s32 0, %v448
    %v450 = vadd.s32 %v445, 1
    %vm451 = vcmp.gt.s32.totalorder %v450, 0
    %v452 = vsel %vm451, %v450, 0
    %v453 = vshrl.u32 %v452, 5
    %v454 = vand.u32 %v452, 31
    %v455 = vsub.s32 32, %v454
    %v456 = vshrl.u32 683565275, %v455
    %v457 = vshll.u32 683565275, %v454
    %v458 = vshrl.u32 2475754826, %v455
    %v459 = vor.u32 %v457, %v458
    %v460 = vshll.u32 2475754826, %v454
    %v461 = vshrl.u32 2131351028, %v455
    %v462 = vor.u32 %v460, %v461
    %v463 = vshll.u32 2131351028, %v454
    %v464 = vshrl.u32 2102212464, %v455
    %v465 = vor.u32 %v463, %v464
    %v466 = vshll.u32 2102212464, %v454
    %v467 = vshrl.u32 920167782, %v455
    %v468 = vor.u32 %v466, %v467
    %v469 = vshll.u32 920167782, %v454
    %v470 = vshrl.u32 1326507024, %v455
    %v471 = vor.u32 %v469, %v470
    %vm472 = vcmp.lt.s32.totalorder %v453, 1
    %vm473 = vcmp.lt.s32.totalorder %v453, 2
    %vm474 = vcmp.lt.s32.totalorder %v453, 3
    %vm475 = vcmp.lt.s32.totalorder %v453, 4
    %v476 = vsel %vm472, %v456, %v459
    %v477 = vsel %vm475, %v465, 2102212464
    %v478 = vsel %vm474, %v462, %v477
    %v479 = vsel %vm473, %v476, %v478
    %v480 = vsel %vm472, %v459, %v462
    %v481 = vsel %vm475, %v468, 920167782
    %v482 = vsel %vm474, %v465, %v481
    %v483 = vsel %vm473, %v480, %v482
    %v484 = vsel %vm472, %v462, %v465
    %v485 = vsel %vm475, %v471, 1326507024
    %v486 = vsel %vm474, %v468, %v485
    %v487 = vsel %vm473, %v484, %v486
    %v488 = vshll.u32 %v448, 8
    %v489 = vmul.u32.u64.compose %v488, %v487
    %v490 = vextract.low.u32 %v489
    %v491 = vextract.high.u32 %v489
    %v492 = vmul.u32.u64.compose %v488, %v483
    %v493 = vextract.low.u32 %v492
    %v494 = vextract.high.u32 %v492
    %v495 = vmul.u32 %v488, %v479
    %v496 = vadd.s32 %v491, %v493
    %vm497 = vc.u32 %v491, %v493
    %v498 = vadd.s32 %v494, 1
    %v499 = vsel %vm497, %v498, %v494
    %v500 = vadd.s32 %v495, %v499
    %v501 = vadd.s32 %v500, 536870912
    %v502 = vshrl.u32 %v501, 30
    %v503 = vshll.u32 %v502, 30
    %v504 = vsub.s32 %v500, %v503
    %vm505 = vcmp.lt.s32.totalorder %v504, 0
    %v506 = vsub.s32 0, %v504
    %v507 = vsel %vm505, %v506, %v504
    %v508 = vclz %v507
    %v509 = vsub.s32 %v508, 2
    %vm510 = vcmp.gt.s32.totalorder 0, %v509
    %v511 = vsel %vm510, 0, %v509
    %v512 = vsub.s32 32, %v511
    %v513 = vshll.u32 %v504, %v511
    %v514 = vshrl.u32 %v496, %v512
    %v515 = vor.u32 %v513, %v514
    %v516 = vsub.s32 4294967266, %v511
    %v517 = vadd.s32 %v516, 127
    %v518 = vshll.u32 %v517, 23
    %v519 = vor.u32 4788187, %v518
    %v520 = vand.u32 2147483647, %v519
    %v522 = vcvt.s32.f32 %v515
    %v523 = vmul.f32 %v522, %v520
    %v524 = vxor.u32 %v523, 2147483648
    %v525 = vsel %vm442, %v524, %v523
    %v526 = vsub.s32 4, %v502
    %v527 = vsel %vm442, %v526, %v502
    %v528 = vsel %vm441, %v166, %v525
    %v529 = vsel %vm441, 0, %v527
    %v530 = vcosq.f32.pop %v528
    %v531 = vsinq.f32.pop %v528
    %vm532 = vweird.f32 %v166
    %v533 = vand.u32 %v529, 3
    %vm534 = vcmp.lt.s32.totalorder %v533, 2
    %vm535 = vcmp.eq.s32.totalorder %v533, 0
    %v536 = vxor.u32 %v531, 2147483648
    %v537 = vsel %vm535, %v530, %v536
    %vm538 = vcmp.eq.s32.totalorder %v533, 2
    %v539 = vxor.u32 %v530, 2147483648
    %v540 = vsel %vm538, %v539, %v531
    %v541 = vsel %vm534, %v537, %v540
    %v542 = vsel %vm532, nan, %v541
    %v543 = vand.u32 2147483647, %v171
    %vm544 = vcmp.le.f32.partialorder %v543, 0.7853982
    %vm545 = vcmp.lt.s32.totalorder %v171, 0
    %v546 = vand.u32 %v171, 2139095040
    %v547 = vshrl.u32 %v546, 23
    %v548 = vsub.s32 %v547, 127
    %v549 = vand.u32 2147483647, %v171
    %v550 = vand.u32 %v549, 8388607
    %v551 = vor.u32 %v550, 8388608
    %v552 = vsub.s32 0, %v551
    %v553 = vadd.s32 %v548, 1
    %vm554 = vcmp.gt.s32.totalorder %v553, 0
    %v555 = vsel %vm554, %v553, 0
    %v556 = vshrl.u32 %v555, 5
    %v557 = vand.u32 %v555, 31
    %v558 = vsub.s32 32, %v557
    %v559 = vshrl.u32 683565275, %v558
    %v560 = vshll.u32 683565275, %v557
    %v561 = vshrl.u32 2475754826, %v558
    %v562 = vor.u32 %v560, %v561
    %v563 = vshll.u32 2475754826, %v557
    %v564 = vshrl.u32 2131351028, %v558
    %v565 = vor.u32 %v563, %v564
    %v566 = vshll.u32 2131351028, %v557
    %v567 = vshrl.u32 2102212464, %v558
    %v568 = vor.u32 %v566, %v567
    %v569 = vshll.u32 2102212464, %v557
    %v570 = vshrl.u32 920167782, %v558
    %v571 = vor.u32 %v569, %v570
    %v572 = vshll.u32 920167782, %v557
    %v573 = vshrl.u32 1326507024, %v558
    %v574 = vor.u32 %v572, %v573
    %vm575 = vcmp.lt.s32.totalorder %v556, 1
    %vm576 = vcmp.lt.s32.totalorder %v556, 2
    %vm577 = vcmp.lt.s32.totalorder %v556, 3
    %vm578 = vcmp.lt.s32.totalorder %v556, 4
    %v579 = vsel %vm575, %v559, %v562
    %v580 = vsel %vm578, %v568, 2102212464
    %v581 = vsel %vm577, %v565, %v580
    %v582 = vsel %vm576, %v579, %v581
    %v583 = vsel %vm575, %v562, %v565
    %v584 = vsel %vm578, %v571, 920167782
    %v585 = vsel %vm577, %v568, %v584
    %v586 = vsel %vm576, %v583, %v585
    %v587 = vsel %vm575, %v565, %v568
    %v588 = vsel %vm578, %v574, 1326507024
    %v589 = vsel %vm577, %v571, %v588
    %v590 = vsel %vm576, %v587, %v589
    %v591 = vshll.u32 %v551, 8
    %v592 = vmul.u32.u64.compose %v591, %v590
    %v593 = vextract.low.u32 %v592
    %v594 = vextract.high.u32 %v592
    %v595 = vmul.u32.u64.compose %v591, %v586
    %v596 = vextract.low.u32 %v595
    %v597 = vextract.high.u32 %v595
    %v598 = vmul.u32 %v591, %v582
    %v599 = vadd.s32 %v594, %v596
    %vm600 = vc.u32 %v594, %v596
    %v601 = vadd.s32 %v597, 1
    %v602 = vsel %vm600, %v601, %v597
    %v603 = vadd.s32 %v598, %v602
    %v604 = vadd.s32 %v603, 536870912
    %v605 = vshrl.u32 %v604, 30
    %v606 = vshll.u32 %v605, 30
    %v607 = vsub.s32 %v603, %v606
    %vm608 = vcmp.lt.s32.totalorder %v607, 0
    %v609 = vsub.s32 0, %v607
    %v610 = vsel %vm608, %v609, %v607
    %v611 = vclz %v610
    %v612 = vsub.s32 %v611, 2
    %vm613 = vcmp.gt.s32.totalorder 0, %v612
    %v614 = vsel %vm613, 0, %v612
    %v615 = vsub.s32 32, %v614
    %v616 = vshll.u32 %v607, %v614
    %v617 = vshrl.u32 %v599, %v615
    %v618 = vor.u32 %v616, %v617
    %v619 = vsub.s32 4294967266, %v614
    %v620 = vadd.s32 %v619, 127
    %v621 = vshll.u32 %v620, 23
    %v622 = vor.u32 4788187, %v621
    %v623 = vand.u32 2147483647, %v622
    %v625 = vcvt.s32.f32 %v618
    %v626 = vmul.f32 %v625, %v623
    %v627 = vxor.u32 %v626, 2147483648
    %v628 = vsel %vm545, %v627, %v626
    %v629 = vsub.s32 4, %v605
    %v630 = vsel %vm545, %v629, %v605
    %v631 = vsel %vm544, %v171, %v628
    %v632 = vsel %vm544, 0, %v630
    %v633 = vcosq.f32.pop %v631
    %v634 = vsinq.f32.pop %v631
    %vm635 = vweird.f32 %v171
    %v636 = vand.u32 %v632, 3
    %vm637 = vcmp.lt.s32.totalorder %v636, 2
    %vm638 = vcmp.eq.s32.totalorder %v636, 0
    %v639 = vxor.u32 %v634, 2147483648
    %v640 = vsel %vm638, %v633, %v639
    %vm641 = vcmp.eq.s32.totalorder %v636, 2
    %v642 = vxor.u32 %v633, 2147483648
    %v643 = vsel %vm641, %v642, %v634
    %v644 = vsel %vm637, %v640, %v643
    %v645 = vsel %vm635, nan, %v644
    %v646 = vand.u32 2147483647, %v176
    %vm647 = vcmp.le.f32.partialorder %v646, 0.7853982
    %vm648 = vcmp.lt.s32.totalorder %v176, 0
    %v649 = vand.u32 %v176, 2139095040
    %v650 = vshrl.u32 %v649, 23
    %v651 = vsub.s32 %v650, 127
    %v652 = vand.u32 2147483647, %v176
    %v653 = vand.u32 %v652, 8388607
    %v654 = vor.u32 %v653, 8388608
    %v655 = vsub.s32 0, %v654
    %v656 = vadd.s32 %v651, 1
    %vm657 = vcmp.gt.s32.totalorder %v656, 0
    %v658 = vsel %vm657, %v656, 0
    %v659 = vshrl.u32 %v658, 5
    %v660 = vand.u32 %v658, 31
    %v661 = vsub.s32 32, %v660
    %v662 = vshrl.u32 683565275, %v661
    %v663 = vshll.u32 683565275, %v660
    %v664 = vshrl.u32 2475754826, %v661
    %v665 = vor.u32 %v663, %v664
    %v666 = vshll.u32 2475754826, %v660
    %v667 = vshrl.u32 2131351028, %v661
    %v668 = vor.u32 %v666, %v667
    %v669 = vshll.u32 2131351028, %v660
    %v670 = vshrl.u32 2102212464, %v661
    %v671 = vor.u32 %v669, %v670
    %v672 = vshll.u32 2102212464, %v660
    %v673 = vshrl.u32 920167782, %v661
    %v674 = vor.u32 %v672, %v673
    %v675 = vshll.u32 920167782, %v660
    %v676 = vshrl.u32 1326507024, %v661
    %v677 = vor.u32 %v675, %v676
    %vm678 = vcmp.lt.s32.totalorder %v659, 1
    %vm679 = vcmp.lt.s32.totalorder %v659, 2
    %vm680 = vcmp.lt.s32.totalorder %v659, 3
    %vm681 = vcmp.lt.s32.totalorder %v659, 4
    %v682 = vsel %vm678, %v662, %v665
    %v683 = vsel %vm681, %v671, 2102212464
    %v684 = vsel %vm680, %v668, %v683
    %v685 = vsel %vm679, %v682, %v684
    %v686 = vsel %vm678, %v665, %v668
    %v687 = vsel %vm681, %v674, 920167782
    %v688 = vsel %vm680, %v671, %v687
    %v689 = vsel %vm679, %v686, %v688
    %v690 = vsel %vm678, %v668, %v671
    %v691 = vsel %vm681, %v677, 1326507024
    %v692 = vsel %vm680, %v674, %v691
    %v693 = vsel %vm679, %v690, %v692
    %v694 = vshll.u32 %v654, 8
    %v695 = vmul.u32.u64.compose %v694, %v693
    %v696 = vextract.low.u32 %v695
    %v697 = vextract.high.u32 %v695
    %v698 = vmul.u32.u64.compose %v694, %v689
    %v699 = vextract.low.u32 %v698
    %v700 = vextract.high.u32 %v698
    %v701 = vmul.u32 %v694, %v685
    %v702 = vadd.s32 %v697, %v699
    %vm703 = vc.u32 %v697, %v699
    %v704 = vadd.s32 %v700, 1
    %v705 = vsel %vm703, %v704, %v700
    %v706 = vadd.s32 %v701, %v705
    %v707 = vadd.s32 %v706, 536870912
    %v708 = vshrl.u32 %v707, 30
    %v709 = vshll.u32 %v708, 30
    %v710 = vsub.s32 %v706, %v709
    %vm711 = vcmp.lt.s32.totalorder %v710, 0
    %v712 = vsub.s32 0, %v710
    %v713 = vsel %vm711, %v712, %v710
    %v714 = vclz %v713
    %v715 = vsub.s32 %v714, 2
    %vm716 = vcmp.gt.s32.totalorder 0, %v715
    %v717 = vsel %vm716, 0, %v715
    %v718 = vsub.s32 32, %v717
    %v719 = vshll.u32 %v710, %v717
    %v720 = vshrl.u32 %v702, %v718
    %v721 = vor.u32 %v719, %v720
    %v722 = vsub.s32 4294967266, %v717
    %v723 = vadd.s32 %v722, 127
    %v724 = vshll.u32 %v723, 23
    %v725 = vor.u32 4788187, %v724
    %v726 = vand.u32 2147483647, %v725
    %v728 = vcvt.s32.f32 %v721
    %v729 = vmul.f32 %v728, %v726
    %v730 = vxor.u32 %v729, 2147483648
    %v731 = vsel %vm648, %v730, %v729
    %v732 = vsub.s32 4, %v708
    %v733 = vsel %vm648, %v732, %v708
    %v734 = vsel %vm647, %v176, %v731
    %v735 = vsel %vm647, 0, %v733
    %v736 = vcosq.f32.pop %v734
    %v737 = vsinq.f32.pop %v734
    %vm738 = vweird.f32 %v176
    %v739 = vand.u32 %v735, 3
    %vm740 = vcmp.lt.s32.totalorder %v739, 2
    %vm741 = vcmp.eq.s32.totalorder %v739, 0
    %v742 = vxor.u32 %v737, 2147483648
    %v743 = vsel %vm741, %v736, %v742
    %vm744 = vcmp.eq.s32.totalorder %v739, 2
    %v745 = vxor.u32 %v736, 2147483648
    %v746 = vsel %vm744, %v745, %v737
    %v747 = vsel %vm740, %v743, %v746
    %v748 = vsel %vm738, nan, %v747
    %v749 = vand.u32 2147483647, %v181
    %vm750 = vcmp.le.f32.partialorder %v749, 0.7853982
    %vm751 = vcmp.lt.s32.totalorder %v181, 0
    %v752 = vand.u32 %v181, 2139095040
    %v753 = vshrl.u32 %v752, 23
    %v754 = vsub.s32 %v753, 127
    %v755 = vand.u32 2147483647, %v181
    %v756 = vand.u32 %v755, 8388607
    %v757 = vor.u32 %v756, 8388608
    %v758 = vsub.s32 0, %v757
    %v759 = vadd.s32 %v754, 1
    %vm760 = vcmp.gt.s32.totalorder %v759, 0
    %v761 = vsel %vm760, %v759, 0
    %v762 = vshrl.u32 %v761, 5
    %v763 = vand.u32 %v761, 31
    %v764 = vsub.s32 32, %v763
    %v765 = vshrl.u32 683565275, %v764
    %v766 = vshll.u32 683565275, %v763
    %v767 = vshrl.u32 2475754826, %v764
    %v768 = vor.u32 %v766, %v767
    %v769 = vshll.u32 2475754826, %v763
    %v770 = vshrl.u32 2131351028, %v764
    %v771 = vor.u32 %v769, %v770
    %v772 = vshll.u32 2131351028, %v763
    %v773 = vshrl.u32 2102212464, %v764
    %v774 = vor.u32 %v772, %v773
    %v775 = vshll.u32 2102212464, %v763
    %v776 = vshrl.u32 920167782, %v764
    %v777 = vor.u32 %v775, %v776
    %v778 = vshll.u32 920167782, %v763
    %v779 = vshrl.u32 1326507024, %v764
    %v780 = vor.u32 %v778, %v779
    %vm781 = vcmp.lt.s32.totalorder %v762, 1
    %vm782 = vcmp.lt.s32.totalorder %v762, 2
    %vm783 = vcmp.lt.s32.totalorder %v762, 3
    %vm784 = vcmp.lt.s32.totalorder %v762, 4
    %v785 = vsel %vm781, %v765, %v768
    %v786 = vsel %vm784, %v774, 2102212464
    %v787 = vsel %vm783, %v771, %v786
    %v788 = vsel %vm782, %v785, %v787
    %v789 = vsel %vm781, %v768, %v771
    %v790 = vsel %vm784, %v777, 920167782
    %v791 = vsel %vm783, %v774, %v790
    %v792 = vsel %vm782, %v789, %v791
    %v793 = vsel %vm781, %v771, %v774
    %v794 = vsel %vm784, %v780, 1326507024
    %v795 = vsel %vm783, %v777, %v794
    %v796 = vsel %vm782, %v793, %v795
    %v797 = vshll.u32 %v757, 8
    %v798 = vmul.u32.u64.compose %v797, %v796
    %v799 = vextract.low.u32 %v798
    %v800 = vextract.high.u32 %v798
    %v801 = vmul.u32.u64.compose %v797, %v792
    %v802 = vextract.low.u32 %v801
    %v803 = vextract.high.u32 %v801
    %v804 = vmul.u32 %v797, %v788
    %v805 = vadd.s32 %v800, %v802
    %vm806 = vc.u32 %v800, %v802
    %v807 = vadd.s32 %v803, 1
    %v808 = vsel %vm806, %v807, %v803
    %v809 = vadd.s32 %v804, %v808
    %v810 = vadd.s32 %v809, 536870912
    %v811 = vshrl.u32 %v810, 30
    %v812 = vshll.u32 %v811, 30
    %v813 = vsub.s32 %v809, %v812
    %vm814 = vcmp.lt.s32.totalorder %v813, 0
    %v815 = vsub.s32 0, %v813
    %v816 = vsel %vm814, %v815, %v813
    %v817 = vclz %v816
    %v818 = vsub.s32 %v817, 2
    %vm819 = vcmp.gt.s32.totalorder 0, %v818
    %v820 = vsel %vm819, 0, %v818
    %v821 = vsub.s32 32, %v820
    %v822 = vshll.u32 %v813, %v820
    %v823 = vshrl.u32 %v805, %v821
    %v824 = vor.u32 %v822, %v823
    %v825 = vsub.s32 4294967266, %v820
    %v826 = vadd.s32 %v825, 127
    %v827 = vshll.u32 %v826, 23
    %v828 = vor.u32 4788187, %v827
    %v829 = vand.u32 2147483647, %v828
    %v831 = vcvt.s32.f32 %v824
    %v832 = vmul.f32 %v831, %v829
    %v833 = vxor.u32 %v832, 2147483648
    %v834 = vsel %vm751, %v833, %v832
    %v835 = vsub.s32 4, %v811
    %v836 = vsel %vm751, %v835, %v811
    %v837 = vsel %vm750, %v181, %v834
    %v838 = vsel %vm750, 0, %v836
    %v839 = vcosq.f32.pop %v837
    %v840 = vsinq.f32.pop %v837
    %vm841 = vweird.f32 %v181
    %v842 = vand.u32 %v838, 3
    %vm843 = vcmp.lt.s32.totalorder %v842, 2
    %vm844 = vcmp.eq.s32.totalorder %v842, 0
    %v845 = vxor.u32 %v840, 2147483648
    %v846 = vsel %vm844, %v839, %v845
    %vm847 = vcmp.eq.s32.totalorder %v842, 2
    %v848 = vxor.u32 %v839, 2147483648
    %v849 = vsel %vm847, %v848, %v840
    %v850 = vsel %vm843, %v846, %v849
    %v851 = vsel %vm841, nan, %v850
    %v852 = vand.u32 2147483647, %v186
    %vm853 = vcmp.le.f32.partialorder %v852, 0.7853982
    %vm854 = vcmp.lt.s32.totalorder %v186, 0
    %v855 = vand.u32 %v186, 2139095040
    %v856 = vshrl.u32 %v855, 23
    %v857 = vsub.s32 %v856, 127
    %v858 = vand.u32 2147483647, %v186
    %v859 = vand.u32 %v858, 8388607
    %v860 = vor.u32 %v859, 8388608
    %v861 = vsub.s32 0, %v860
    %v862 = vadd.s32 %v857, 1
    %vm863 = vcmp.gt.s32.totalorder %v862, 0
    %v864 = vsel %vm863, %v862, 0
    %v865 = vshrl.u32 %v864, 5
    %v866 = vand.u32 %v864, 31
    %v867 = vsub.s32 32, %v866
    %v868 = vshrl.u32 683565275, %v867
    %v869 = vshll.u32 683565275, %v866
    %v870 = vshrl.u32 2475754826, %v867
    %v871 = vor.u32 %v869, %v870
    %v872 = vshll.u32 2475754826, %v866
    %v873 = vshrl.u32 2131351028, %v867
    %v874 = vor.u32 %v872, %v873
    %v875 = vshll.u32 2131351028, %v866
    %v876 = vshrl.u32 2102212464, %v867
    %v877 = vor.u32 %v875, %v876
    %v878 = vshll.u32 2102212464, %v866
    %v879 = vshrl.u32 920167782, %v867
    %v880 = vor.u32 %v878, %v879
    %v881 = vshll.u32 920167782, %v866
    %v882 = vshrl.u32 1326507024, %v867
    %v883 = vor.u32 %v881, %v882
    %vm884 = vcmp.lt.s32.totalorder %v865, 1
    %vm885 = vcmp.lt.s32.totalorder %v865, 2
    %vm886 = vcmp.lt.s32.totalorder %v865, 3
    %vm887 = vcmp.lt.s32.totalorder %v865, 4
    %v888 = vsel %vm884, %v868, %v871
    %v889 = vsel %vm887, %v877, 2102212464
    %v890 = vsel %vm886, %v874, %v889
    %v891 = vsel %vm885, %v888, %v890
    %v892 = vsel %vm884, %v871, %v874
    %v893 = vsel %vm887, %v880, 920167782
    %v894 = vsel %vm886, %v877, %v893
    %v895 = vsel %vm885, %v892, %v894
    %v896 = vsel %vm884, %v874, %v877
    %v897 = vsel %vm887, %v883, 1326507024
    %v898 = vsel %vm886, %v880, %v897
    %v899 = vsel %vm885, %v896, %v898
    %v900 = vshll.u32 %v860, 8
    %v901 = vmul.u32.u64.compose %v900, %v899
    %v902 = vextract.low.u32 %v901
    %v903 = vextract.high.u32 %v901
    %v904 = vmul.u32.u64.compose %v900, %v895
    %v905 = vextract.low.u32 %v904
    %v906 = vextract.high.u32 %v904
    %v907 = vmul.u32 %v900, %v891
    %v908 = vadd.s32 %v903, %v905
    %vm909 = vc.u32 %v903, %v905
    %v910 = vadd.s32 %v906, 1
    %v911 = vsel %vm909, %v910, %v906
    %v912 = vadd.s32 %v907, %v911
    %v913 = vadd.s32 %v912, 536870912
    %v914 = vshrl.u32 %v913, 30
    %v915 = vshll.u32 %v914, 30
    %v916 = vsub.s32 %v912, %v915
    %vm917 = vcmp.lt.s32.totalorder %v916, 0
    %v918 = vsub.s32 0, %v916
    %v919 = vsel %vm917, %v918, %v916
    %v920 = vclz %v919
    %v921 = vsub.s32 %v920, 2
    %vm922 = vcmp.gt.s32.totalorder 0, %v921
    %v923 = vsel %vm922, 0, %v921
    %v924 = vsub.s32 32, %v923
    %v925 = vshll.u32 %v916, %v923
    %v926 = vshrl.u32 %v908, %v924
    %v927 = vor.u32 %v925, %v926
    %v928 = vsub.s32 4294967266, %v923
    %v929 = vadd.s32 %v928, 127
    %v930 = vshll.u32 %v929, 23
    %v931 = vor.u32 4788187, %v930
    %v932 = vand.u32 2147483647, %v931
    %v934 = vcvt.s32.f32 %v927
    %v935 = vmul.f32 %v934, %v932
    %v936 = vxor.u32 %v935, 2147483648
    %v937 = vsel %vm854, %v936, %v935
    %v938 = vsub.s32 4, %v914
    %v939 = vsel %vm854, %v938, %v914
    %v940 = vsel %vm853, %v186, %v937
    %v941 = vsel %vm853, 0, %v939
    %v942 = vcosq.f32.pop %v940
    %v943 = vsinq.f32.pop %v940
    %vm944 = vweird.f32 %v186
    %v945 = vand.u32 %v941, 3
    %vm946 = vcmp.lt.s32.totalorder %v945, 2
    %vm947 = vcmp.eq.s32.totalorder %v945, 0
    %v948 = vxor.u32 %v943, 2147483648
    %v949 = vsel %vm947, %v942, %v948
    %vm950 = vcmp.eq.s32.totalorder %v945, 2
    %v951 = vxor.u32 %v942, 2147483648
    %v952 = vsel %vm950, %v951, %v943
    %v953 = vsel %vm946, %v949, %v952
    %v954 = vsel %vm944, nan, %v953
    %v955 = vand.u32 2147483647, %v191
    %vm956 = vcmp.le.f32.partialorder %v955, 0.7853982
    %vm957 = vcmp.lt.s32.totalorder %v191, 0
    %v958 = vand.u32 %v191, 2139095040
    %v959 = vshrl.u32 %v958, 23
    %v960 = vsub.s32 %v959, 127
    %v961 = vand.u32 2147483647, %v191
    %v962 = vand.u32 %v961, 8388607
    %v963 = vor.u32 %v962, 8388608
    %v964 = vsub.s32 0, %v963
    %v965 = vadd.s32 %v960, 1
    %vm966 = vcmp.gt.s32.totalorder %v965, 0
    %v967 = vsel %vm966, %v965, 0
    %v968 = vshrl.u32 %v967, 5
    %v969 = vand.u32 %v967, 31
    %v970 = vsub.s32 32, %v969
    %v971 = vshrl.u32 683565275, %v970
    %v972 = vshll.u32 683565275, %v969
    %v973 = vshrl.u32 2475754826, %v970
    %v974 = vor.u32 %v972, %v973
    %v975 = vshll.u32 2475754826, %v969
    %v976 = vshrl.u32 2131351028, %v970
    %v977 = vor.u32 %v975, %v976
    %v978 = vshll.u32 2131351028, %v969
    %v979 = vshrl.u32 2102212464, %v970
    %v980 = vor.u32 %v978, %v979
    %v981 = vshll.u32 2102212464, %v969
    %v982 = vshrl.u32 920167782, %v970
    %v983 = vor.u32 %v981, %v982
    %v984 = vshll.u32 920167782, %v969
    %v985 = vshrl.u32 1326507024, %v970
    %v986 = vor.u32 %v984, %v985
    %vm987 = vcmp.lt.s32.totalorder %v968, 1
    %vm988 = vcmp.lt.s32.totalorder %v968, 2
    %vm989 = vcmp.lt.s32.totalorder %v968, 3
    %vm990 = vcmp.lt.s32.totalorder %v968, 4
    %v991 = vsel %vm987, %v971, %v974
    %v992 = vsel %vm990, %v980, 2102212464
    %v993 = vsel %vm989, %v977, %v992
    %v994 = vsel %vm988, %v991, %v993
    %v995 = vsel %vm987, %v974, %v977
    %v996 = vsel %vm990, %v983, 920167782
    %v997 = vsel %vm989, %v980, %v996
    %v998 = vsel %vm988, %v995, %v997
    %v999 = vsel %vm987, %v977, %v980
    %v1000 = vsel %vm990, %v986, 1326507024
    %v1001 = vsel %vm989, %v983, %v1000
    %v1002 = vsel %vm988, %v999, %v1001
    %v1003 = vshll.u32 %v963, 8
    %v1004 = vmul.u32.u64.compose %v1003, %v1002
    %v1005 = vextract.low.u32 %v1004
    %v1006 = vextract.high.u32 %v1004
    %v1007 = vmul.u32.u64.compose %v1003, %v998
    %v1008 = vextract.low.u32 %v1007
    %v1009 = vextract.high.u32 %v1007
    %v1010 = vmul.u32 %v1003, %v994
    %v1011 = vadd.s32 %v1006, %v1008
    %vm1012 = vc.u32 %v1006, %v1008
    %v1013 = vadd.s32 %v1009, 1
    %v1014 = vsel %vm1012, %v1013, %v1009
    %v1015 = vadd.s32 %v1010, %v1014
    %v1016 = vadd.s32 %v1015, 536870912
    %v1017 = vshrl.u32 %v1016, 30
    %v1018 = vshll.u32 %v1017, 30
    %v1019 = vsub.s32 %v1015, %v1018
    %vm1020 = vcmp.lt.s32.totalorder %v1019, 0
    %v1021 = vsub.s32 0, %v1019
    %v1022 = vsel %vm1020, %v1021, %v1019
    %v1023 = vclz %v1022
    %v1024 = vsub.s32 %v1023, 2
    %vm1025 = vcmp.gt.s32.totalorder 0, %v1024
    %v1026 = vsel %vm1025, 0, %v1024
    %v1027 = vsub.s32 32, %v1026
    %v1028 = vshll.u32 %v1019, %v1026
    %v1029 = vshrl.u32 %v1011, %v1027
    %v1030 = vor.u32 %v1028, %v1029
    %v1031 = vsub.s32 4294967266, %v1026
    %v1032 = vadd.s32 %v1031, 127
    %v1033 = vshll.u32 %v1032, 23
    %v1034 = vor.u32 4788187, %v1033
    %v1035 = vand.u32 2147483647, %v1034
    %v1037 = vcvt.s32.f32 %v1030
    %v1038 = vmul.f32 %v1037, %v1035
    %v1039 = vxor.u32 %v1038, 2147483648
    %v1040 = vsel %vm957, %v1039, %v1038
    %v1041 = vsub.s32 4, %v1017
    %v1042 = vsel %vm957, %v1041, %v1017
    %v1043 = vsel %vm956, %v191, %v1040
    %v1044 = vsel %vm956, 0, %v1042
    %v1045 = vcosq.f32.pop %v1043
    %v1046 = vsinq.f32.pop %v1043
    %vm1047 = vweird.f32 %v191
    %v1048 = vand.u32 %v1044, 3
    %vm1049 = vcmp.lt.s32.totalorder %v1048, 2
    %vm1050 = vcmp.eq.s32.totalorder %v1048, 0
    %v1051 = vxor.u32 %v1046, 2147483648
    %v1052 = vsel %vm1050, %v1045, %v1051
    %vm1053 = vcmp.eq.s32.totalorder %v1048, 2
    %v1054 = vxor.u32 %v1045, 2147483648
    %v1055 = vsel %vm1053, %v1054, %v1046
    %v1056 = vsel %vm1049, %v1052, %v1055
    %v1057 = vsel %vm1047, nan, %v1056
    %v1058 = vand.u32 2147483647, %v196
    %vm1059 = vcmp.le.f32.partialorder %v1058, 0.7853982
    %vm1060 = vcmp.lt.s32.totalorder %v196, 0
    %v1061 = vand.u32 %v196, 2139095040
    %v1062 = vshrl.u32 %v1061, 23
    %v1063 = vsub.s32 %v1062, 127
    %v1064 = vand.u32 2147483647, %v196
    %v1065 = vand.u32 %v1064, 8388607
    %v1066 = vor.u32 %v1065, 8388608
    %v1067 = vsub.s32 0, %v1066
    %v1068 = vadd.s32 %v1063, 1
    %vm1069 = vcmp.gt.s32.totalorder %v1068, 0
    %v1070 = vsel %vm1069, %v1068, 0
    %v1071 = vshrl.u32 %v1070, 5
    %v1072 = vand.u32 %v1070, 31
    %v1073 = vsub.s32 32, %v1072
    %v1074 = vshrl.u32 683565275, %v1073
    %v1075 = vshll.u32 683565275, %v1072
    %v1076 = vshrl.u32 2475754826, %v1073
    %v1077 = vor.u32 %v1075, %v1076
    %v1078 = vshll.u32 2475754826, %v1072
    %v1079 = vshrl.u32 2131351028, %v1073
    %v1080 = vor.u32 %v1078, %v1079
    %v1081 = vshll.u32 2131351028, %v1072
    %v1082 = vshrl.u32 2102212464, %v1073
    %v1083 = vor.u32 %v1081, %v1082
    %v1084 = vshll.u32 2102212464, %v1072
    %v1085 = vshrl.u32 920167782, %v1073
    %v1086 = vor.u32 %v1084, %v1085
    %v1087 = vshll.u32 920167782, %v1072
    %v1088 = vshrl.u32 1326507024, %v1073
    %v1089 = vor.u32 %v1087, %v1088
    %vm1090 = vcmp.lt.s32.totalorder %v1071, 1
    %vm1091 = vcmp.lt.s32.totalorder %v1071, 2
    %vm1092 = vcmp.lt.s32.totalorder %v1071, 3
    %vm1093 = vcmp.lt.s32.totalorder %v1071, 4
    %v1094 = vsel %vm1090, %v1074, %v1077
    %v1095 = vsel %vm1093, %v1083, 2102212464
    %v1096 = vsel %vm1092, %v1080, %v1095
    %v1097 = vsel %vm1091, %v1094, %v1096
    %v1098 = vsel %vm1090, %v1077, %v1080
    %v1099 = vsel %vm1093, %v1086, 920167782
    %v1100 = vsel %vm1092, %v1083, %v1099
    %v1101 = vsel %vm1091, %v1098, %v1100
    %v1102 = vsel %vm1090, %v1080, %v1083
    %v1103 = vsel %vm1093, %v1089, 1326507024
    %v1104 = vsel %vm1092, %v1086, %v1103
    %v1105 = vsel %vm1091, %v1102, %v1104
    %v1106 = vshll.u32 %v1066, 8
    %v1107 = vmul.u32.u64.compose %v1106, %v1105
    %v1108 = vextract.low.u32 %v1107
    %v1109 = vextract.high.u32 %v1107
    %v1110 = vmul.u32.u64.compose %v1106, %v1101
    %v1111 = vextract.low.u32 %v1110
    %v1112 = vextract.high.u32 %v1110
    %v1113 = vmul.u32 %v1106, %v1097
    %v1114 = vadd.s32 %v1109, %v1111
    %vm1115 = vc.u32 %v1109, %v1111
    %v1116 = vadd.s32 %v1112, 1
    %v1117 = vsel %vm1115, %v1116, %v1112
    %v1118 = vadd.s32 %v1113, %v1117
    %v1119 = vadd.s32 %v1118, 536870912
    %v1120 = vshrl.u32 %v1119, 30
    %v1121 = vshll.u32 %v1120, 30
    %v1122 = vsub.s32 %v1118, %v1121
    %vm1123 = vcmp.lt.s32.totalorder %v1122, 0
    %v1124 = vsub.s32 0, %v1122
    %v1125 = vsel %vm1123, %v1124, %v1122
    %v1126 = vclz %v1125
    %v1127 = vsub.s32 %v1126, 2
    %vm1128 = vcmp.gt.s32.totalorder 0, %v1127
    %v1129 = vsel %vm1128, 0, %v1127
    %v1130 = vsub.s32 32, %v1129
    %v1131 = vshll.u32 %v1122, %v1129
    %v1132 = vshrl.u32 %v1114, %v1130
    %v1133 = vor.u32 %v1131, %v1132
    %v1134 = vsub.s32 4294967266, %v1129
    %v1135 = vadd.s32 %v1134, 127
    %v1136 = vshll.u32 %v1135, 23
    %v1137 = vor.u32 4788187, %v1136
    %v1138 = vand.u32 2147483647, %v1137
    %v1140 = vcvt.s32.f32 %v1133
    %v1141 = vmul.f32 %v1140, %v1138
    %v1142 = vxor.u32 %v1141, 2147483648
    %v1143 = vsel %vm1060, %v1142, %v1141
    %v1144 = vsub.s32 4, %v1120
    %v1145 = vsel %vm1060, %v1144, %v1120
    %v1146 = vsel %vm1059, %v196, %v1143
    %v1147 = vsel %vm1059, 0, %v1145
    %v1148 = vcosq.f32.pop %v1146
    %v1149 = vsinq.f32.pop %v1146
    %vm1150 = vweird.f32 %v196
    %v1151 = vand.u32 %v1147, 3
    %vm1152 = vcmp.lt.s32.totalorder %v1151, 2
    %vm1153 = vcmp.eq.s32.totalorder %v1151, 0
    %v1154 = vxor.u32 %v1149, 2147483648
    %v1155 = vsel %vm1153, %v1148, %v1154
    %vm1156 = vcmp.eq.s32.totalorder %v1151, 2
    %v1157 = vxor.u32 %v1148, 2147483648
    %v1158 = vsel %vm1156, %v1157, %v1149
    %v1159 = vsel %vm1152, %v1155, %v1158
    %v1160 = vsel %vm1150, nan, %v1159
    %v1161 = vand.u32 2147483647, %v201
    %vm1162 = vcmp.le.f32.partialorder %v1161, 0.7853982
    %vm1163 = vcmp.lt.s32.totalorder %v201, 0
    %v1164 = vand.u32 %v201, 2139095040
    %v1165 = vshrl.u32 %v1164, 23
    %v1166 = vsub.s32 %v1165, 127
    %v1167 = vand.u32 2147483647, %v201
    %v1168 = vand.u32 %v1167, 8388607
    %v1169 = vor.u32 %v1168, 8388608
    %v1170 = vsub.s32 0, %v1169
    %v1171 = vadd.s32 %v1166, 1
    %vm1172 = vcmp.gt.s32.totalorder %v1171, 0
    %v1173 = vsel %vm1172, %v1171, 0
    %v1174 = vshrl.u32 %v1173, 5
    %v1175 = vand.u32 %v1173, 31
    %v1176 = vsub.s32 32, %v1175
    %v1177 = vshrl.u32 683565275, %v1176
    %v1178 = vshll.u32 683565275, %v1175
    %v1179 = vshrl.u32 2475754826, %v1176
    %v1180 = vor.u32 %v1178, %v1179
    %v1181 = vshll.u32 2475754826, %v1175
    %v1182 = vshrl.u32 2131351028, %v1176
    %v1183 = vor.u32 %v1181, %v1182
    %v1184 = vshll.u32 2131351028, %v1175
    %v1185 = vshrl.u32 2102212464, %v1176
    %v1186 = vor.u32 %v1184, %v1185
    %v1187 = vshll.u32 2102212464, %v1175
    %v1188 = vshrl.u32 920167782, %v1176
    %v1189 = vor.u32 %v1187, %v1188
    %v1190 = vshll.u32 920167782, %v1175
    %v1191 = vshrl.u32 1326507024, %v1176
    %v1192 = vor.u32 %v1190, %v1191
    %vm1193 = vcmp.lt.s32.totalorder %v1174, 1
    %vm1194 = vcmp.lt.s32.totalorder %v1174, 2
    %vm1195 = vcmp.lt.s32.totalorder %v1174, 3
    %vm1196 = vcmp.lt.s32.totalorder %v1174, 4
    %v1197 = vsel %vm1193, %v1177, %v1180
    %v1198 = vsel %vm1196, %v1186, 2102212464
    %v1199 = vsel %vm1195, %v1183, %v1198
    %v1200 = vsel %vm1194, %v1197, %v1199
    %v1201 = vsel %vm1193, %v1180, %v1183
    %v1202 = vsel %vm1196, %v1189, 920167782
    %v1203 = vsel %vm1195, %v1186, %v1202
    %v1204 = vsel %vm1194, %v1201, %v1203
    %v1205 = vsel %vm1193, %v1183, %v1186
    %v1206 = vsel %vm1196, %v1192, 1326507024
    %v1207 = vsel %vm1195, %v1189, %v1206
    %v1208 = vsel %vm1194, %v1205, %v1207
    %v1209 = vshll.u32 %v1169, 8
    %v1210 = vmul.u32.u64.compose %v1209, %v1208
    %v1211 = vextract.low.u32 %v1210
    %v1212 = vextract.high.u32 %v1210
    %v1213 = vmul.u32.u64.compose %v1209, %v1204
    %v1214 = vextract.low.u32 %v1213
    %v1215 = vextract.high.u32 %v1213
    %v1216 = vmul.u32 %v1209, %v1200
    %v1217 = vadd.s32 %v1212, %v1214
    %vm1218 = vc.u32 %v1212, %v1214
    %v1219 = vadd.s32 %v1215, 1
    %v1220 = vsel %vm1218, %v1219, %v1215
    %v1221 = vadd.s32 %v1216, %v1220
    %v1222 = vadd.s32 %v1221, 536870912
    %v1223 = vshrl.u32 %v1222, 30
    %v1224 = vshll.u32 %v1223, 30
    %v1225 = vsub.s32 %v1221, %v1224
    %vm1226 = vcmp.lt.s32.totalorder %v1225, 0
    %v1227 = vsub.s32 0, %v1225
    %v1228 = vsel %vm1226, %v1227, %v1225
    %v1229 = vclz %v1228
    %v1230 = vsub.s32 %v1229, 2
    %vm1231 = vcmp.gt.s32.totalorder 0, %v1230
    %v1232 = vsel %vm1231, 0, %v1230
    %v1233 = vsub.s32 32, %v1232
    %v1234 = vshll.u32 %v1225, %v1232
    %v1235 = vshrl.u32 %v1217, %v1233
    %v1236 = vor.u32 %v1234, %v1235
    %v1237 = vsub.s32 4294967266, %v1232
    %v1238 = vadd.s32 %v1237, 127
    %v1239 = vshll.u32 %v1238, 23
    %v1240 = vor.u32 4788187, %v1239
    %v1241 = vand.u32 2147483647, %v1240
    %v1243 = vcvt.s32.f32 %v1236
    %v1244 = vmul.f32 %v1243, %v1241
    %v1245 = vxor.u32 %v1244, 2147483648
    %v1246 = vsel %vm1163, %v1245, %v1244
    %v1247 = vsub.s32 4, %v1223
    %v1248 = vsel %vm1163, %v1247, %v1223
    %v1249 = vsel %vm1162, %v201, %v1246
    %v1250 = vsel %vm1162, 0, %v1248
    %v1251 = vcosq.f32.pop %v1249
    %v1252 = vsinq.f32.pop %v1249
    %vm1253 = vweird.f32 %v201
    %v1254 = vand.u32 %v1250, 3
    %vm1255 = vcmp.lt.s32.totalorder %v1254, 2
    %vm1256 = vcmp.eq.s32.totalorder %v1254, 0
    %v1257 = vxor.u32 %v1252, 2147483648
    %v1258 = vsel %vm1256, %v1251, %v1257
    %vm1259 = vcmp.eq.s32.totalorder %v1254, 2
    %v1260 = vxor.u32 %v1251, 2147483648
    %v1261 = vsel %vm1259, %v1260, %v1252
    %v1262 = vsel %vm1255, %v1258, %v1261
    %v1263 = vsel %vm1253, nan, %v1262
    %v1264 = vand.u32 2147483647, %v206
    %vm1265 = vcmp.le.f32.partialorder %v1264, 0.7853982
    %vm1266 = vcmp.lt.s32.totalorder %v206, 0
    %v1267 = vand.u32 %v206, 2139095040
    %v1268 = vshrl.u32 %v1267, 23
    %v1269 = vsub.s32 %v1268, 127
    %v1270 = vand.u32 2147483647, %v206
    %v1271 = vand.u32 %v1270, 8388607
    %v1272 = vor.u32 %v1271, 8388608
    %v1273 = vsub.s32 0, %v1272
    %v1274 = vadd.s32 %v1269, 1
    %vm1275 = vcmp.gt.s32.totalorder %v1274, 0
    %v1276 = vsel %vm1275, %v1274, 0
    %v1277 = vshrl.u32 %v1276, 5
    %v1278 = vand.u32 %v1276, 31
    %v1279 = vsub.s32 32, %v1278
    %v1280 = vshrl.u32 683565275, %v1279
    %v1281 = vshll.u32 683565275, %v1278
    %v1282 = vshrl.u32 2475754826, %v1279
    %v1283 = vor.u32 %v1281, %v1282
    %v1284 = vshll.u32 2475754826, %v1278
    %v1285 = vshrl.u32 2131351028, %v1279
    %v1286 = vor.u32 %v1284, %v1285
    %v1287 = vshll.u32 2131351028, %v1278
    %v1288 = vshrl.u32 2102212464, %v1279
    %v1289 = vor.u32 %v1287, %v1288
    %v1290 = vshll.u32 2102212464, %v1278
    %v1291 = vshrl.u32 920167782, %v1279
    %v1292 = vor.u32 %v1290, %v1291
    %v1293 = vshll.u32 920167782, %v1278
    %v1294 = vshrl.u32 1326507024, %v1279
    %v1295 = vor.u32 %v1293, %v1294
    %vm1296 = vcmp.lt.s32.totalorder %v1277, 1
    %vm1297 = vcmp.lt.s32.totalorder %v1277, 2
    %vm1298 = vcmp.lt.s32.totalorder %v1277, 3
    %vm1299 = vcmp.lt.s32.totalorder %v1277, 4
    %v1300 = vsel %vm1296, %v1280, %v1283
    %v1301 = vsel %vm1299, %v1289, 2102212464
    %v1302 = vsel %vm1298, %v1286, %v1301
    %v1303 = vsel %vm1297, %v1300, %v1302
    %v1304 = vsel %vm1296, %v1283, %v1286
    %v1305 = vsel %vm1299, %v1292, 920167782
    %v1306 = vsel %vm1298, %v1289, %v1305
    %v1307 = vsel %vm1297, %v1304, %v1306
    %v1308 = vsel %vm1296, %v1286, %v1289
    %v1309 = vsel %vm1299, %v1295, 1326507024
    %v1310 = vsel %vm1298, %v1292, %v1309
    %v1311 = vsel %vm1297, %v1308, %v1310
    %v1312 = vshll.u32 %v1272, 8
    %v1313 = vmul.u32.u64.compose %v1312, %v1311
    %v1314 = vextract.low.u32 %v1313
    %v1315 = vextract.high.u32 %v1313
    %v1316 = vmul.u32.u64.compose %v1312, %v1307
    %v1317 = vextract.low.u32 %v1316
    %v1318 = vextract.high.u32 %v1316
    %v1319 = vmul.u32 %v1312, %v1303
    %v1320 = vadd.s32 %v1315, %v1317
    %vm1321 = vc.u32 %v1315, %v1317
    %v1322 = vadd.s32 %v1318, 1
    %v1323 = vsel %vm1321, %v1322, %v1318
    %v1324 = vadd.s32 %v1319, %v1323
    %v1325 = vadd.s32 %v1324, 536870912
    %v1326 = vshrl.u32 %v1325, 30
    %v1327 = vshll.u32 %v1326, 30
    %v1328 = vsub.s32 %v1324, %v1327
    %vm1329 = vcmp.lt.s32.totalorder %v1328, 0
    %v1330 = vsub.s32 0, %v1328
    %v1331 = vsel %vm1329, %v1330, %v1328
    %v1332 = vclz %v1331
    %v1333 = vsub.s32 %v1332, 2
    %vm1334 = vcmp.gt.s32.totalorder 0, %v1333
    %v1335 = vsel %vm1334, 0, %v1333
    %v1336 = vsub.s32 32, %v1335
    %v1337 = vshll.u32 %v1328, %v1335
    %v1338 = vshrl.u32 %v1320, %v1336
    %v1339 = vor.u32 %v1337, %v1338
    %v1340 = vsub.s32 4294967266, %v1335
    %v1341 = vadd.s32 %v1340, 127
    %v1342 = vshll.u32 %v1341, 23
    %v1343 = vor.u32 4788187, %v1342
    %v1344 = vand.u32 2147483647, %v1343
    %v1346 = vcvt.s32.f32 %v1339
    %v1347 = vmul.f32 %v1346, %v1344
    %v1348 = vxor.u32 %v1347, 2147483648
    %v1349 = vsel %vm1266, %v1348, %v1347
    %v1350 = vsub.s32 4, %v1326
    %v1351 = vsel %vm1266, %v1350, %v1326
    %v1352 = vsel %vm1265, %v206, %v1349
    %v1353 = vsel %vm1265, 0, %v1351
    %v1354 = vcosq.f32.pop %v1352
    %v1355 = vsinq.f32.pop %v1352
    %vm1356 = vweird.f32 %v206
    %v1357 = vand.u32 %v1353, 3
    %vm1358 = vcmp.lt.s32.totalorder %v1357, 2
    %vm1359 = vcmp.eq.s32.totalorder %v1357, 0
    %v1360 = vxor.u32 %v1355, 2147483648
    %v1361 = vsel %vm1359, %v1354, %v1360
    %vm1362 = vcmp.eq.s32.totalorder %v1357, 2
    %v1363 = vxor.u32 %v1354, 2147483648
    %v1364 = vsel %vm1362, %v1363, %v1355
    %v1365 = vsel %vm1358, %v1361, %v1364
    %v1366 = vsel %vm1356, nan, %v1365
    %v1367 = vand.u32 2147483647, %v211
    %vm1368 = vcmp.le.f32.partialorder %v1367, 0.7853982
    %vm1369 = vcmp.lt.s32.totalorder %v211, 0
    %v1370 = vand.u32 %v211, 2139095040
    %v1371 = vshrl.u32 %v1370, 23
    %v1372 = vsub.s32 %v1371, 127
    %v1373 = vand.u32 2147483647, %v211
    %v1374 = vand.u32 %v1373, 8388607
    %v1375 = vor.u32 %v1374, 8388608
    %v1376 = vsub.s32 0, %v1375
    %v1377 = vadd.s32 %v1372, 1
    %vm1378 = vcmp.gt.s32.totalorder %v1377, 0
    %v1379 = vsel %vm1378, %v1377, 0
    %v1380 = vshrl.u32 %v1379, 5
    %v1381 = vand.u32 %v1379, 31
    %v1382 = vsub.s32 32, %v1381
    %v1383 = vshrl.u32 683565275, %v1382
    %v1384 = vshll.u32 683565275, %v1381
    %v1385 = vshrl.u32 2475754826, %v1382
    %v1386 = vor.u32 %v1384, %v1385
    %v1387 = vshll.u32 2475754826, %v1381
    %v1388 = vshrl.u32 2131351028, %v1382
    %v1389 = vor.u32 %v1387, %v1388
    %v1390 = vshll.u32 2131351028, %v1381
    %v1391 = vshrl.u32 2102212464, %v1382
    %v1392 = vor.u32 %v1390, %v1391
    %v1393 = vshll.u32 2102212464, %v1381
    %v1394 = vshrl.u32 920167782, %v1382
    %v1395 = vor.u32 %v1393, %v1394
    %v1396 = vshll.u32 920167782, %v1381
    %v1397 = vshrl.u32 1326507024, %v1382
    %v1398 = vor.u32 %v1396, %v1397
    %vm1399 = vcmp.lt.s32.totalorder %v1380, 1
    %vm1400 = vcmp.lt.s32.totalorder %v1380, 2
    %vm1401 = vcmp.lt.s32.totalorder %v1380, 3
    %vm1402 = vcmp.lt.s32.totalorder %v1380, 4
    %v1403 = vsel %vm1399, %v1383, %v1386
    %v1404 = vsel %vm1402, %v1392, 2102212464
    %v1405 = vsel %vm1401, %v1389, %v1404
    %v1406 = vsel %vm1400, %v1403, %v1405
    %v1407 = vsel %vm1399, %v1386, %v1389
    %v1408 = vsel %vm1402, %v1395, 920167782
    %v1409 = vsel %vm1401, %v1392, %v1408
    %v1410 = vsel %vm1400, %v1407, %v1409
    %v1411 = vsel %vm1399, %v1389, %v1392
    %v1412 = vsel %vm1402, %v1398, 1326507024
    %v1413 = vsel %vm1401, %v1395, %v1412
    %v1414 = vsel %vm1400, %v1411, %v1413
    %v1415 = vshll.u32 %v1375, 8
    %v1416 = vmul.u32.u64.compose %v1415, %v1414
    %v1417 = vextract.low.u32 %v1416
    %v1418 = vextract.high.u32 %v1416
    %v1419 = vmul.u32.u64.compose %v1415, %v1410
    %v1420 = vextract.low.u32 %v1419
    %v1421 = vextract.high.u32 %v1419
    %v1422 = vmul.u32 %v1415, %v1406
    %v1423 = vadd.s32 %v1418, %v1420
    %vm1424 = vc.u32 %v1418, %v1420
    %v1425 = vadd.s32 %v1421, 1
    %v1426 = vsel %vm1424, %v1425, %v1421
    %v1427 = vadd.s32 %v1422, %v1426
    %v1428 = vadd.s32 %v1427, 536870912
    %v1429 = vshrl.u32 %v1428, 30
    %v1430 = vshll.u32 %v1429, 30
    %v1431 = vsub.s32 %v1427, %v1430
    %vm1432 = vcmp.lt.s32.totalorder %v1431, 0
    %v1433 = vsub.s32 0, %v1431
    %v1434 = vsel %vm1432, %v1433, %v1431
    %v1435 = vclz %v1434
    %v1436 = vsub.s32 %v1435, 2
    %vm1437 = vcmp.gt.s32.totalorder 0, %v1436
    %v1438 = vsel %vm1437, 0, %v1436
    %v1439 = vsub.s32 32, %v1438
    %v1440 = vshll.u32 %v1431, %v1438
    %v1441 = vshrl.u32 %v1423, %v1439
    %v1442 = vor.u32 %v1440, %v1441
    %v1443 = vsub.s32 4294967266, %v1438
    %v1444 = vadd.s32 %v1443, 127
    %v1445 = vshll.u32 %v1444, 23
    %v1446 = vor.u32 4788187, %v1445
    %v1447 = vand.u32 2147483647, %v1446
    %v1449 = vcvt.s32.f32 %v1442
    %v1450 = vmul.f32 %v1449, %v1447
    %v1451 = vxor.u32 %v1450, 2147483648
    %v1452 = vsel %vm1369, %v1451, %v1450
    %v1453 = vsub.s32 4, %v1429
    %v1454 = vsel %vm1369, %v1453, %v1429
    %v1455 = vsel %vm1368, %v211, %v1452
    %v1456 = vsel %vm1368, 0, %v1454
    %v1457 = vcosq.f32.pop %v1455
    %v1458 = vsinq.f32.pop %v1455
    %vm1459 = vweird.f32 %v211
    %v1460 = vand.u32 %v1456, 3
    %vm1461 = vcmp.lt.s32.totalorder %v1460, 2
    %vm1462 = vcmp.eq.s32.totalorder %v1460, 0
    %v1463 = vxor.u32 %v1458, 2147483648
    %v1464 = vsel %vm1462, %v1457, %v1463
    %vm1465 = vcmp.eq.s32.totalorder %v1460, 2
    %v1466 = vxor.u32 %v1457, 2147483648
    %v1467 = vsel %vm1465, %v1466, %v1458
    %v1468 = vsel %vm1461, %v1464, %v1467
    %v1469 = vsel %vm1459, nan, %v1468
    %v1470 = vand.u32 2147483647, %v216
    %vm1471 = vcmp.le.f32.partialorder %v1470, 0.7853982
    %vm1472 = vcmp.lt.s32.totalorder %v216, 0
    %v1473 = vand.u32 %v216, 2139095040
    %v1474 = vshrl.u32 %v1473, 23
    %v1475 = vsub.s32 %v1474, 127
    %v1476 = vand.u32 2147483647, %v216
    %v1477 = vand.u32 %v1476, 8388607
    %v1478 = vor.u32 %v1477, 8388608
    %v1479 = vsub.s32 0, %v1478
    %v1480 = vadd.s32 %v1475, 1
    %vm1481 = vcmp.gt.s32.totalorder %v1480, 0
    %v1482 = vsel %vm1481, %v1480, 0
    %v1483 = vshrl.u32 %v1482, 5
    %v1484 = vand.u32 %v1482, 31
    %v1485 = vsub.s32 32, %v1484
    %v1486 = vshrl.u32 683565275, %v1485
    %v1487 = vshll.u32 683565275, %v1484
    %v1488 = vshrl.u32 2475754826, %v1485
    %v1489 = vor.u32 %v1487, %v1488
    %v1490 = vshll.u32 2475754826, %v1484
    %v1491 = vshrl.u32 2131351028, %v1485
    %v1492 = vor.u32 %v1490, %v1491
    %v1493 = vshll.u32 2131351028, %v1484
    %v1494 = vshrl.u32 2102212464, %v1485
    %v1495 = vor.u32 %v1493, %v1494
    %v1496 = vshll.u32 2102212464, %v1484
    %v1497 = vshrl.u32 920167782, %v1485
    %v1498 = vor.u32 %v1496, %v1497
    %v1499 = vshll.u32 920167782, %v1484
    %v1500 = vshrl.u32 1326507024, %v1485
    %v1501 = vor.u32 %v1499, %v1500
    %vm1502 = vcmp.lt.s32.totalorder %v1483, 1
    %vm1503 = vcmp.lt.s32.totalorder %v1483, 2
    %vm1504 = vcmp.lt.s32.totalorder %v1483, 3
    %vm1505 = vcmp.lt.s32.totalorder %v1483, 4
    %v1506 = vsel %vm1502, %v1486, %v1489
    %v1507 = vsel %vm1505, %v1495, 2102212464
    %v1508 = vsel %vm1504, %v1492, %v1507
    %v1509 = vsel %vm1503, %v1506, %v1508
    %v1510 = vsel %vm1502, %v1489, %v1492
    %v1511 = vsel %vm1505, %v1498, 920167782
    %v1512 = vsel %vm1504, %v1495, %v1511
    %v1513 = vsel %vm1503, %v1510, %v1512
    %v1514 = vsel %vm1502, %v1492, %v1495
    %v1515 = vsel %vm1505, %v1501, 1326507024
    %v1516 = vsel %vm1504, %v1498, %v1515
    %v1517 = vsel %vm1503, %v1514, %v1516
    %v1518 = vshll.u32 %v1478, 8
    %v1519 = vmul.u32.u64.compose %v1518, %v1517
    %v1520 = vextract.low.u32 %v1519
    %v1521 = vextract.high.u32 %v1519
    %v1522 = vmul.u32.u64.compose %v1518, %v1513
    %v1523 = vextract.low.u32 %v1522
    %v1524 = vextract.high.u32 %v1522
    %v1525 = vmul.u32 %v1518, %v1509
    %v1526 = vadd.s32 %v1521, %v1523
    %vm1527 = vc.u32 %v1521, %v1523
    %v1528 = vadd.s32 %v1524, 1
    %v1529 = vsel %vm1527, %v1528, %v1524
    %v1530 = vadd.s32 %v1525, %v1529
    %v1531 = vadd.s32 %v1530, 536870912
    %v1532 = vshrl.u32 %v1531, 30
    %v1533 = vshll.u32 %v1532, 30
    %v1534 = vsub.s32 %v1530, %v1533
    %vm1535 = vcmp.lt.s32.totalorder %v1534, 0
    %v1536 = vsub.s32 0, %v1534
    %v1537 = vsel %vm1535, %v1536, %v1534
    %v1538 = vclz %v1537
    %v1539 = vsub.s32 %v1538, 2
    %vm1540 = vcmp.gt.s32.totalorder 0, %v1539
    %v1541 = vsel %vm1540, 0, %v1539
    %v1542 = vsub.s32 32, %v1541
    %v1543 = vshll.u32 %v1534, %v1541
    %v1544 = vshrl.u32 %v1526, %v1542
    %v1545 = vor.u32 %v1543, %v1544
    %v1546 = vsub.s32 4294967266, %v1541
    %v1547 = vadd.s32 %v1546, 127
    %v1548 = vshll.u32 %v1547, 23
    %v1549 = vor.u32 4788187, %v1548
    %v1550 = vand.u32 2147483647, %v1549
    %v1552 = vcvt.s32.f32 %v1545
    %v1553 = vmul.f32 %v1552, %v1550
    %v1554 = vxor.u32 %v1553, 2147483648
    %v1555 = vsel %vm1472, %v1554, %v1553
    %v1556 = vsub.s32 4, %v1532
    %v1557 = vsel %vm1472, %v1556, %v1532
    %v1558 = vsel %vm1471, %v216, %v1555
    %v1559 = vsel %vm1471, 0, %v1557
    %v1560 = vcosq.f32.pop %v1558
    %v1561 = vsinq.f32.pop %v1558
    %vm1562 = vweird.f32 %v216
    %v1563 = vand.u32 %v1559, 3
    %vm1564 = vcmp.lt.s32.totalorder %v1563, 2
    %vm1565 = vcmp.eq.s32.totalorder %v1563, 0
    %v1566 = vxor.u32 %v1561, 2147483648
    %v1567 = vsel %vm1565, %v1560, %v1566
    %vm1568 = vcmp.eq.s32.totalorder %v1563, 2
    %v1569 = vxor.u32 %v1560, 2147483648
    %v1570 = vsel %vm1568, %v1569, %v1561
    %v1571 = vsel %vm1564, %v1567, %v1570
    %v1572 = vsel %vm1562, nan, %v1571
    %v1573 = vand.u32 2147483647, %v221
    %vm1574 = vcmp.le.f32.partialorder %v1573, 0.7853982
    %vm1575 = vcmp.lt.s32.totalorder %v221, 0
    %v1576 = vand.u32 %v221, 2139095040
    %v1577 = vshrl.u32 %v1576, 23
    %v1578 = vsub.s32 %v1577, 127
    %v1579 = vand.u32 2147483647, %v221
    %v1580 = vand.u32 %v1579, 8388607
    %v1581 = vor.u32 %v1580, 8388608
    %v1582 = vsub.s32 0, %v1581
    %v1583 = vadd.s32 %v1578, 1
    %vm1584 = vcmp.gt.s32.totalorder %v1583, 0
    %v1585 = vsel %vm1584, %v1583, 0
    %v1586 = vshrl.u32 %v1585, 5
    %v1587 = vand.u32 %v1585, 31
    %v1588 = vsub.s32 32, %v1587
    %v1589 = vshrl.u32 683565275, %v1588
    %v1590 = vshll.u32 683565275, %v1587
    %v1591 = vshrl.u32 2475754826, %v1588
    %v1592 = vor.u32 %v1590, %v1591
    %v1593 = vshll.u32 2475754826, %v1587
    %v1594 = vshrl.u32 2131351028, %v1588
    %v1595 = vor.u32 %v1593, %v1594
    %v1596 = vshll.u32 2131351028, %v1587
    %v1597 = vshrl.u32 2102212464, %v1588
    %v1598 = vor.u32 %v1596, %v1597
    %v1599 = vshll.u32 2102212464, %v1587
    %v1600 = vshrl.u32 920167782, %v1588
    %v1601 = vor.u32 %v1599, %v1600
    %v1602 = vshll.u32 920167782, %v1587
    %v1603 = vshrl.u32 1326507024, %v1588
    %v1604 = vor.u32 %v1602, %v1603
    %vm1605 = vcmp.lt.s32.totalorder %v1586, 1
    %vm1606 = vcmp.lt.s32.totalorder %v1586, 2
    %vm1607 = vcmp.lt.s32.totalorder %v1586, 3
    %vm1608 = vcmp.lt.s32.totalorder %v1586, 4
    %v1609 = vsel %vm1605, %v1589, %v1592
    %v1610 = vsel %vm1608, %v1598, 2102212464
    %v1611 = vsel %vm1607, %v1595, %v1610
    %v1612 = vsel %vm1606, %v1609, %v1611
    %v1613 = vsel %vm1605, %v1592, %v1595
    %v1614 = vsel %vm1608, %v1601, 920167782
    %v1615 = vsel %vm1607, %v1598, %v1614
    %v1616 = vsel %vm1606, %v1613, %v1615
    %v1617 = vsel %vm1605, %v1595, %v1598
    %v1618 = vsel %vm1608, %v1604, 1326507024
    %v1619 = vsel %vm1607, %v1601, %v1618
    %v1620 = vsel %vm1606, %v1617, %v1619
    %v1621 = vshll.u32 %v1581, 8
    %v1622 = vmul.u32.u64.compose %v1621, %v1620
    %v1623 = vextract.low.u32 %v1622
    %v1624 = vextract.high.u32 %v1622
    %v1625 = vmul.u32.u64.compose %v1621, %v1616
    %v1626 = vextract.low.u32 %v1625
    %v1627 = vextract.high.u32 %v1625
    %v1628 = vmul.u32 %v1621, %v1612
    %v1629 = vadd.s32 %v1624, %v1626
    %vm1630 = vc.u32 %v1624, %v1626
    %v1631 = vadd.s32 %v1627, 1
    %v1632 = vsel %vm1630, %v1631, %v1627
    %v1633 = vadd.s32 %v1628, %v1632
    %v1634 = vadd.s32 %v1633, 536870912
    %v1635 = vshrl.u32 %v1634, 30
    %v1636 = vshll.u32 %v1635, 30
    %v1637 = vsub.s32 %v1633, %v1636
    %vm1638 = vcmp.lt.s32.totalorder %v1637, 0
    %v1639 = vsub.s32 0, %v1637
    %v1640 = vsel %vm1638, %v1639, %v1637
    %v1641 = vclz %v1640
    %v1642 = vsub.s32 %v1641, 2
    %vm1643 = vcmp.gt.s32.totalorder 0, %v1642
    %v1644 = vsel %vm1643, 0, %v1642
    %v1645 = vsub.s32 32, %v1644
    %v1646 = vshll.u32 %v1637, %v1644
    %v1647 = vshrl.u32 %v1629, %v1645
    %v1648 = vor.u32 %v1646, %v1647
    %v1649 = vsub.s32 4294967266, %v1644
    %v1650 = vadd.s32 %v1649, 127
    %v1651 = vshll.u32 %v1650, 23
    %v1652 = vor.u32 4788187, %v1651
    %v1653 = vand.u32 2147483647, %v1652
    %v1655 = vcvt.s32.f32 %v1648
    %v1656 = vmul.f32 %v1655, %v1653
    %v1657 = vxor.u32 %v1656, 2147483648
    %v1658 = vsel %vm1575, %v1657, %v1656
    %v1659 = vsub.s32 4, %v1635
    %v1660 = vsel %vm1575, %v1659, %v1635
    %v1661 = vsel %vm1574, %v221, %v1658
    %v1662 = vsel %vm1574, 0, %v1660
    %v1663 = vcosq.f32.pop %v1661
    %v1664 = vsinq.f32.pop %v1661
    %vm1665 = vweird.f32 %v221
    %v1666 = vand.u32 %v1662, 3
    %vm1667 = vcmp.lt.s32.totalorder %v1666, 2
    %vm1668 = vcmp.eq.s32.totalorder %v1666, 0
    %v1669 = vxor.u32 %v1664, 2147483648
    %v1670 = vsel %vm1668, %v1663, %v1669
    %vm1671 = vcmp.eq.s32.totalorder %v1666, 2
    %v1672 = vxor.u32 %v1663, 2147483648
    %v1673 = vsel %vm1671, %v1672, %v1664
    %v1674 = vsel %vm1667, %v1670, %v1673
    %v1675 = vsel %vm1665, nan, %v1674
    %v1676 = vand.u32 2147483647, %v226
    %vm1677 = vcmp.le.f32.partialorder %v1676, 0.7853982
    %vm1678 = vcmp.lt.s32.totalorder %v226, 0
    %v1679 = vand.u32 %v226, 2139095040
    %v1680 = vshrl.u32 %v1679, 23
    %v1681 = vsub.s32 %v1680, 127
    %v1682 = vand.u32 2147483647, %v226
    %v1683 = vand.u32 %v1682, 8388607
    %v1684 = vor.u32 %v1683, 8388608
    %v1685 = vsub.s32 0, %v1684
    %v1686 = vadd.s32 %v1681, 1
    %vm1687 = vcmp.gt.s32.totalorder %v1686, 0
    %v1688 = vsel %vm1687, %v1686, 0
    %v1689 = vshrl.u32 %v1688, 5
    %v1690 = vand.u32 %v1688, 31
    %v1691 = vsub.s32 32, %v1690
    %v1692 = vshrl.u32 683565275, %v1691
    %v1693 = vshll.u32 683565275, %v1690
    %v1694 = vshrl.u32 2475754826, %v1691
    %v1695 = vor.u32 %v1693, %v1694
    %v1696 = vshll.u32 2475754826, %v1690
    %v1697 = vshrl.u32 2131351028, %v1691
    %v1698 = vor.u32 %v1696, %v1697
    %v1699 = vshll.u32 2131351028, %v1690
    %v1700 = vshrl.u32 2102212464, %v1691
    %v1701 = vor.u32 %v1699, %v1700
    %v1702 = vshll.u32 2102212464, %v1690
    %v1703 = vshrl.u32 920167782, %v1691
    %v1704 = vor.u32 %v1702, %v1703
    %v1705 = vshll.u32 920167782, %v1690
    %v1706 = vshrl.u32 1326507024, %v1691
    %v1707 = vor.u32 %v1705, %v1706
    %vm1708 = vcmp.lt.s32.totalorder %v1689, 1
    %vm1709 = vcmp.lt.s32.totalorder %v1689, 2
    %vm1710 = vcmp.lt.s32.totalorder %v1689, 3
    %vm1711 = vcmp.lt.s32.totalorder %v1689, 4
    %v1712 = vsel %vm1708, %v1692, %v1695
    %v1713 = vsel %vm1711, %v1701, 2102212464
    %v1714 = vsel %vm1710, %v1698, %v1713
    %v1715 = vsel %vm1709, %v1712, %v1714
    %v1716 = vsel %vm1708, %v1695, %v1698
    %v1717 = vsel %vm1711, %v1704, 920167782
    %v1718 = vsel %vm1710, %v1701, %v1717
    %v1719 = vsel %vm1709, %v1716, %v1718
    %v1720 = vsel %vm1708, %v1698, %v1701
    %v1721 = vsel %vm1711, %v1707, 1326507024
    %v1722 = vsel %vm1710, %v1704, %v1721
    %v1723 = vsel %vm1709, %v1720, %v1722
    %v1724 = vshll.u32 %v1684, 8
    %v1725 = vmul.u32.u64.compose %v1724, %v1723
    %v1726 = vextract.low.u32 %v1725
    %v1727 = vextract.high.u32 %v1725
    %v1728 = vmul.u32.u64.compose %v1724, %v1719
    %v1729 = vextract.low.u32 %v1728
    %v1730 = vextract.high.u32 %v1728
    %v1731 = vmul.u32 %v1724, %v1715
    %v1732 = vadd.s32 %v1727, %v1729
    %vm1733 = vc.u32 %v1727, %v1729
    %v1734 = vadd.s32 %v1730, 1
    %v1735 = vsel %vm1733, %v1734, %v1730
    %v1736 = vadd.s32 %v1731, %v1735
    %v1737 = vadd.s32 %v1736, 536870912
    %v1738 = vshrl.u32 %v1737, 30
    %v1739 = vshll.u32 %v1738, 30
    %v1740 = vsub.s32 %v1736, %v1739
    %vm1741 = vcmp.lt.s32.totalorder %v1740, 0
    %v1742 = vsub.s32 0, %v1740
    %v1743 = vsel %vm1741, %v1742, %v1740
    %v1744 = vclz %v1743
    %v1745 = vsub.s32 %v1744, 2
    %vm1746 = vcmp.gt.s32.totalorder 0, %v1745
    %v1747 = vsel %vm1746, 0, %v1745
    %v1748 = vsub.s32 32, %v1747
    %v1749 = vshll.u32 %v1740, %v1747
    %v1750 = vshrl.u32 %v1732, %v1748
    %v1751 = vor.u32 %v1749, %v1750
    %v1752 = vsub.s32 4294967266, %v1747
    %v1753 = vadd.s32 %v1752, 127
    %v1754 = vshll.u32 %v1753, 23
    %v1755 = vor.u32 4788187, %v1754
    %v1756 = vand.u32 2147483647, %v1755
    %v1758 = vcvt.s32.f32 %v1751
    %v1759 = vmul.f32 %v1758, %v1756
    %v1760 = vxor.u32 %v1759, 2147483648
    %v1761 = vsel %vm1678, %v1760, %v1759
    %v1762 = vsub.s32 4, %v1738
    %v1763 = vsel %vm1678, %v1762, %v1738
    %v1764 = vsel %vm1677, %v226, %v1761
    %v1765 = vsel %vm1677, 0, %v1763
    %v1766 = vcosq.f32.pop %v1764
    %v1767 = vsinq.f32.pop %v1764
    %vm1768 = vweird.f32 %v226
    %v1769 = vand.u32 %v1765, 3
    %vm1770 = vcmp.lt.s32.totalorder %v1769, 2
    %vm1771 = vcmp.eq.s32.totalorder %v1769, 0
    %v1772 = vxor.u32 %v1767, 2147483648
    %v1773 = vsel %vm1771, %v1766, %v1772
    %vm1774 = vcmp.eq.s32.totalorder %v1769, 2
    %v1775 = vxor.u32 %v1766, 2147483648
    %v1776 = vsel %vm1774, %v1775, %v1767
    %v1777 = vsel %vm1770, %v1773, %v1776
    %v1778 = vsel %vm1768, nan, %v1777
    %v1779 = vand.u32 2147483647, %v231
    %vm1780 = vcmp.le.f32.partialorder %v1779, 0.7853982
    %vm1781 = vcmp.lt.s32.totalorder %v231, 0
    %v1782 = vand.u32 %v231, 2139095040
    %v1783 = vshrl.u32 %v1782, 23
    %v1784 = vsub.s32 %v1783, 127
    %v1785 = vand.u32 2147483647, %v231
    %v1786 = vand.u32 %v1785, 8388607
    %v1787 = vor.u32 %v1786, 8388608
    %v1788 = vsub.s32 0, %v1787
    %v1789 = vadd.s32 %v1784, 1
    %vm1790 = vcmp.gt.s32.totalorder %v1789, 0
    %v1791 = vsel %vm1790, %v1789, 0
    %v1792 = vshrl.u32 %v1791, 5
    %v1793 = vand.u32 %v1791, 31
    %v1794 = vsub.s32 32, %v1793
    %v1795 = vshrl.u32 683565275, %v1794
    %v1796 = vshll.u32 683565275, %v1793
    %v1797 = vshrl.u32 2475754826, %v1794
    %v1798 = vor.u32 %v1796, %v1797
    %v1799 = vshll.u32 2475754826, %v1793
    %v1800 = vshrl.u32 2131351028, %v1794
    %v1801 = vor.u32 %v1799, %v1800
    %v1802 = vshll.u32 2131351028, %v1793
    %v1803 = vshrl.u32 2102212464, %v1794
    %v1804 = vor.u32 %v1802, %v1803
    %v1805 = vshll.u32 2102212464, %v1793
    %v1806 = vshrl.u32 920167782, %v1794
    %v1807 = vor.u32 %v1805, %v1806
    %v1808 = vshll.u32 920167782, %v1793
    %v1809 = vshrl.u32 1326507024, %v1794
    %v1810 = vor.u32 %v1808, %v1809
    %vm1811 = vcmp.lt.s32.totalorder %v1792, 1
    %vm1812 = vcmp.lt.s32.totalorder %v1792, 2
    %vm1813 = vcmp.lt.s32.totalorder %v1792, 3
    %vm1814 = vcmp.lt.s32.totalorder %v1792, 4
    %v1815 = vsel %vm1811, %v1795, %v1798
    %v1816 = vsel %vm1814, %v1804, 2102212464
    %v1817 = vsel %vm1813, %v1801, %v1816
    %v1818 = vsel %vm1812, %v1815, %v1817
    %v1819 = vsel %vm1811, %v1798, %v1801
    %v1820 = vsel %vm1814, %v1807, 920167782
    %v1821 = vsel %vm1813, %v1804, %v1820
    %v1822 = vsel %vm1812, %v1819, %v1821
    %v1823 = vsel %vm1811, %v1801, %v1804
    %v1824 = vsel %vm1814, %v1810, 1326507024
    %v1825 = vsel %vm1813, %v1807, %v1824
    %v1826 = vsel %vm1812, %v1823, %v1825
    %v1827 = vshll.u32 %v1787, 8
    %v1828 = vmul.u32.u64.compose %v1827, %v1826
    %v1829 = vextract.low.u32 %v1828
    %v1830 = vextract.high.u32 %v1828
    %v1831 = vmul.u32.u64.compose %v1827, %v1822
    %v1832 = vextract.low.u32 %v1831
    %v1833 = vextract.high.u32 %v1831
    %v1834 = vmul.u32 %v1827, %v1818
    %v1835 = vadd.s32 %v1830, %v1832
    %vm1836 = vc.u32 %v1830, %v1832
    %v1837 = vadd.s32 %v1833, 1
    %v1838 = vsel %vm1836, %v1837, %v1833
    %v1839 = vadd.s32 %v1834, %v1838
    %v1840 = vadd.s32 %v1839, 536870912
    %v1841 = vshrl.u32 %v1840, 30
    %v1842 = vshll.u32 %v1841, 30
    %v1843 = vsub.s32 %v1839, %v1842
    %vm1844 = vcmp.lt.s32.totalorder %v1843, 0
    %v1845 = vsub.s32 0, %v1843
    %v1846 = vsel %vm1844, %v1845, %v1843
    %v1847 = vclz %v1846
    %v1848 = vsub.s32 %v1847, 2
    %vm1849 = vcmp.gt.s32.totalorder 0, %v1848
    %v1850 = vsel %vm1849, 0, %v1848
    %v1851 = vsub.s32 32, %v1850
    %v1852 = vshll.u32 %v1843, %v1850
    %v1853 = vshrl.u32 %v1835, %v1851
    %v1854 = vor.u32 %v1852, %v1853
    %v1855 = vsub.s32 4294967266, %v1850
    %v1856 = vadd.s32 %v1855, 127
    %v1857 = vshll.u32 %v1856, 23
    %v1858 = vor.u32 4788187, %v1857
    %v1859 = vand.u32 2147483647, %v1858
    %v1861 = vcvt.s32.f32 %v1854
    %v1862 = vmul.f32 %v1861, %v1859
    %v1863 = vxor.u32 %v1862, 2147483648
    %v1864 = vsel %vm1781, %v1863, %v1862
    %v1865 = vsub.s32 4, %v1841
    %v1866 = vsel %vm1781, %v1865, %v1841
    %v1867 = vsel %vm1780, %v231, %v1864
    %v1868 = vsel %vm1780, 0, %v1866
    %v1869 = vcosq.f32.pop %v1867
    %v1870 = vsinq.f32.pop %v1867
    %vm1871 = vweird.f32 %v231
    %v1872 = vand.u32 %v1868, 3
    %vm1873 = vcmp.lt.s32.totalorder %v1872, 2
    %vm1874 = vcmp.eq.s32.totalorder %v1872, 0
    %v1875 = vxor.u32 %v1870, 2147483648
    %v1876 = vsel %vm1874, %v1869, %v1875
    %vm1877 = vcmp.eq.s32.totalorder %v1872, 2
    %v1878 = vxor.u32 %v1869, 2147483648
    %v1879 = vsel %vm1877, %v1878, %v1870
    %v1880 = vsel %vm1873, %v1876, %v1879
    %v1881 = vsel %vm1871, nan, %v1880
    %v1882 = vmul.f32 %v336, 0.088388346
    %v1883 = vmul.f32 %v439, 0.088388346
    %v1884 = vmul.f32 %v542, 0.088388346
    %v1885 = vmul.f32 %v645, 0.088388346
    %v1886 = vmul.f32 %v748, 0.088388346
    %v1887 = vmul.f32 %v851, 0.088388346
    %v1888 = vmul.f32 %v954, 0.088388346
    %v1889 = vmul.f32 %v1057, 0.088388346
    %v1890 = vmul.f32 %v1160, 0.088388346
    %v1891 = vmul.f32 %v1263, 0.088388346
    %v1892 = vmul.f32 %v1366, 0.088388346
    %v1893 = vmul.f32 %v1469, 0.088388346
    %v1894 = vmul.f32 %v1572, 0.088388346
    %v1895 = vmul.f32 %v1675, 0.088388346
    %v1896 = vmul.f32 %v1778, 0.088388346
    %v1897 = vmul.f32 %v1881, 0.088388346
    %v1898 = vld [vmem:[%s2] sm:$0xff]
    %1899 = vmatprep.subr.mxu0 0.0
    %1900 = vmatpush1.msra.mxu0 %v1882
    %1901 = vmatprep.subr.mxu0 0.0
    %1902 = vmatpush1.msra.mxu0 %v1883
    %1903 = vmatprep.subr.mxu0 0.0
    %1904 = vmatpush1.msra.mxu0 %v1884
    %1905 = vmatprep.subr.mxu0 0.0
    %1906 = vmatpush1.msra.mxu0 %v1885
    %1907 = vmatprep.subr.mxu0 0.0
    %1908 = vmatpush1.msra.mxu0 %v1886
    %1909 = vmatprep.subr.mxu0 0.0
    %1910 = vmatpush1.msra.mxu0 %v1887
    %1911 = vmatprep.subr.mxu0 0.0
    %1912 = vmatpush1.msra.mxu0 %v1888
    %1913 = vmatprep.subr.mxu0 0.0
    %1914 = vmatpush1.msra.mxu0 %v1889
    %1915 = vmatprep.subr.mxu0 0.0
    %1916 = vmatpush1.msra.mxu0 %v1890
    %1917 = vmatprep.subr.mxu0 0.0
    %1918 = vmatpush1.msra.mxu0 %v1891
    %1919 = vmatprep.subr.mxu0 0.0
    %1920 = vmatpush1.msra.mxu0 %v1892
    %1921 = vmatprep.subr.mxu0 0.0
    %1922 = vmatpush1.msra.mxu0 %v1893
    %1923 = vmatprep.subr.mxu0 0.0
    %1924 = vmatpush1.msra.mxu0 %v1894
    %1925 = vmatprep.subr.mxu0 0.0
    %1926 = vmatpush1.msra.mxu0 %v1895
    %1927 = vmatprep.subr.mxu0 0.0
    %1928 = vmatpush1.msra.mxu0 %v1896
    %1929 = vmatprep.subr.mxu0 0.0
    %1930 = vmatpush1.msra.mxu0 %v1897
    %1931 = vmatprep.subr.mxu0 0.0
    %1932 = vmatpush1.msra.mxu0 0.0
    %1933 = vmatprep.subr.mxu0 0.0
    %1934 = vmatpush1.msra.mxu0 0.0
    %1935 = vmatprep.subr.mxu0 0.0
    %1936 = vmatpush1.msra.mxu0 0.0
    %1937 = vmatprep.subr.mxu0 0.0
    %1938 = vmatpush1.msra.mxu0 0.0
    %1939 = vmatprep.subr.mxu0 0.0
    %1940 = vmatpush1.msra.mxu0 0.0
    %1941 = vmatprep.subr.mxu0 0.0
    %1942 = vmatpush1.msra.mxu0 0.0
    %1943 = vmatprep.subr.mxu0 0.0
    %1944 = vmatpush1.msra.mxu0 0.0
    %1945 = vmatprep.subr.mxu0 0.0
    %1946 = vmatpush1.msra.mxu0 0.0
    %1947 = vmatprep.subr.mxu0 0.0
    %1948 = vmatpush1.msra.mxu0 0.0
    %1949 = vmatprep.subr.mxu0 0.0
    %1950 = vmatpush1.msra.mxu0 0.0
    %1951 = vmatprep.subr.mxu0 0.0
    %1952 = vmatpush1.msra.mxu0 0.0
    %1953 = vmatprep.subr.mxu0 0.0
    %1954 = vmatpush1.msra.mxu0 0.0
    %1955 = vmatprep.subr.mxu0 0.0
    %1956 = vmatpush1.msra.mxu0 0.0
    %1957 = vmatprep.subr.mxu0 0.0
    %1958 = vmatpush1.msra.mxu0 0.0
    %1959 = vmatprep.subr.mxu0 0.0
    %1960 = vmatpush1.msra.mxu0 0.0
    %1961 = vmatprep.subr.mxu0 0.0
    %1962 = vmatpush1.msra.mxu0 0.0
    %1963 = vmatprep.mubr.f32.mxu0 0.0
    %1964 = vmatmul.mubr.f32.gmra.mrb[0].mxu0 %v1898
    %v1965 = vpop.f32.mrb[0].mxu0
    %v1966 = vadd.f32 0.0, %v1965
    %v1967 = vpop.f32.mrb[0].mxu0
    %1968 = vdwg.mxu0
    %v1969 = vld [vmem:[%s3] sm:$0x1]
    %1971 = vset.pattern.permute.xlu0 0
    %1972 = vperm.xlu0 %1971, %v1969
    %v1973 = vpop.permute.xlu0 %1972
    %v1975 = vadd.f32 %v1966, %v1973
    %v1976 = vld [vmem:[%s3 + $0x1] sm:$0x1]
    %1978 = vset.pattern.permute.xlu0 0
    %1979 = vperm.xlu0 %1978, %v1976
    %v1980 = vpop.permute.xlu0 %1979
    %v1981 = vrot.slane %v1980, 7
    %v1983 = vadd.f32 %v1966, %v1981
    %v1984 = vsub.f32 0.0, %v1975
    %v1985 = vmul.f32 %v1984, 1.442695
    %v1986 = vpow.pop %v1985
    %v1987 = vadd.f32 %v1986, 1.0
    %v1988 = vrcp.pop %v1987
    %v1989 = vmul.f32 1.0, %v1988
    %vm1990 = vcmp.gt.f32.partialorder %v1983, 20.0
    %v1991 = vmin.f32 %v1983, 20.0
    %v1992 = vmul.f32 %v1991, 1.442695
    %v1993 = vpow.pop %v1992
    %v1994 = vadd.f32 %v1993, 1.0
    %v1995 = vlog2.pop %v1994
    %v1996 = vmul.f32 %v1995, 0.6931472
    %v1997 = vsel %vm1990, %v1983, %v1996
    %v1998 = vadd.f32 %v1997, 0.01
    %v1999 = vrcp.pop %v1998
    %v2000 = vmul.f32 1.0, %v1999
    %v2001 = vsub.f32 1.0, %v1989
    %v2003 = vrot.slane %v2000, 1
    %v2005 = vmul.f32 %v2001, %v2003
    %vm2006 = vcmp.lt.f32.partialorder %v2005, 0.0
    %v2007 = vsel %vm2006, -1.0, 1.0
    %v2008 = vand.u32 2147483647, %v2005
    %v2009 = vmul.f32 %v2008, 0.3275911
    %v2010 = vadd.f32 %v2009, 1.0
    %v2011 = vrcp.pop %v2010
    %v2012 = vmul.f32 1.0, %v2011
    %v2013 = vmul.f32 %v2012, 1.0614054
    %v2014 = vadd.f32 %v2013, -1.4531521
    %v2015 = vmul.f32 %v2014, %v2012
    %v2016 = vadd.f32 %v2015, 1.4214138
    %v2017 = vmul.f32 %v2016, %v2012
    %v2018 = vadd.f32 %v2017, -0.28449672
    %v2019 = vmul.f32 %v2018, %v2012
    %v2020 = vadd.f32 %v2019, 0.2548296
    %v2021 = vmul.f32 %v2020, %v2012
    %v2022 = vsub.f32 0.0, %v2008
    %v2023 = vmul.f32 %v2022, %v2008
    %v2024 = vmul.f32 %v2023, 1.442695
    %v2025 = vpow.pop %v2024
    %v2026 = vmul.f32 %v2021, %v2025
    %v2027 = vsub.f32 1.0, %v2026
    %v2028 = vmul.f32 %v2007, %v2027
    %v2029 = vmul.f32 %v1989, %v2003
    %vm2030 = vcmp.lt.f32.partialorder %v2029, 0.0
    %v2031 = vsel %vm2030, -1.0, 1.0
    %v2032 = vand.u32 2147483647, %v2029
    %v2033 = vmul.f32 %v2032, 0.3275911
    %v2034 = vadd.f32 %v2033, 1.0
    %v2035 = vrcp.pop %v2034
    %v2036 = vmul.f32 1.0, %v2035
    %v2037 = vmul.f32 %v2036, 1.0614054
    %v2038 = vadd.f32 %v2037, -1.4531521
    %v2039 = vmul.f32 %v2038, %v2036
    %v2040 = vadd.f32 %v2039, 1.4214138
    %v2041 = vmul.f32 %v2040, %v2036
    %v2042 = vadd.f32 %v2041, -0.28449672
    %v2043 = vmul.f32 %v2042, %v2036
    %v2044 = vadd.f32 %v2043, 0.2548296
    %v2045 = vmul.f32 %v2044, %v2036
    %v2046 = vsub.f32 0.0, %v2032
    %v2047 = vmul.f32 %v2046, %v2032
    %v2048 = vmul.f32 %v2047, 1.442695
    %v2049 = vpow.pop %v2048
    %v2050 = vmul.f32 %v2045, %v2049
    %v2051 = vsub.f32 1.0, %v2050
    %v2052 = vmul.f32 %v2031, %v2051
    %v2053 = vadd.f32 %v2028, %v2052
    %v2054 = vrcp.pop %v2053
    %v2055 = vmul.f32 1.0, %v2054
    %v2056 = vld [vmem:[%s4] sm:$0xff]
    %v2057 = vlaneseq
    %v2058 = vshrl.u32 %v2057, 7
    %v2059 = vsub.s32 0, %v2058
    %v2060 = vrot.slane %v1989, %v2059
    %v2061 = vsub.f32 %v2060, %v2056
    %v2062 = vlaneseq
    %v2063 = vshrl.u32 %v2062, 7
    %v2064 = vsub.s32 1, %v2063
    %v2065 = vrot.slane %v2000, %v2064
    %v2066 = vmul.f32 %v2061, %v2065
    %v2067 = vmul.f32 %v2066, %v2066
    %v2068 = vmul.f32 %v2067, 0.1009109
    %v2069 = vadd.f32 %v2068, 1.1283792
    %v2070 = vmul.f32 %v2069, %v2066
    %v2071 = vtanh.pop %v2070
    %v2072 = vlaneseq
    %v2073 = vshrl.u32 %v2072, 7
    %v2074 = vsub.s32 0, %v2073
    %v2075 = vrot.slane %v2028, %v2074
    %v2076 = vadd.f32 %v2075, %v2071
    %v2077 = vmul.f32 %v2056, %v2076
    %v2078 = vlaneseq
    %v2079 = vshrl.u32 %v2078, 7
    %v2080 = vsub.s32 0, %v2079
    %v2081 = vrot.slane %v2055, %v2080
    %v2082 = vmul.f32 %v2077, %v2081
    %2083 = vst [vmem:[#allocation2] sm:$0xff] %v2082
    // Predicated region
    $region22: #{tpu_custom_call.1} parent=1 // pred_check
      _
    $region23: #{tpu_custom_call.1} parent=1 // pred_check_branch
      %2085 = sbr.rel (0) target = $region25
    $region24: #{tpu_custom_call.1} parent=1 // pred_region
      %s2087 = ssub.s32 128, 128
      %2088 = vsyncadd [#allocation3], %s2087
      %s2090 = sshll.u32 [#allocation2], 4
      %s2091 = int_to_ptr.vmem [resolvable:$true] %s2090
      %2093 = dma.vmem_to_hbm [thread:$0]  %s2091, 128, %s5, [#allocation3]
    $region25: #{tpu_custom_call.1} parent=1 // pred_fallthru
      _
    // Predicated region
    $region26: #{tpu_custom_call.1} parent=1 // pred_check
      _
    $region27: #{tpu_custom_call.1} parent=1 // pred_check_branch
      %2095 = sbr.rel (0) target = $region29
    $region28: #{tpu_custom_call.1} parent=1 // pred_region
      %2096 = dma.done [#allocation3], 128
    $region29: #{tpu_custom_call.1} parent=1 // pred_fallthru
      _
    %2097 = vsyncpa [#allocation3], 1

</llo_original>
